<compile_context>
chip_gen: v7x
topology: tpu7x:2x2x1
jax: 0.10.0
libtpu: 0.0.40
codegen_flags: <defaults>
</compile_context>

<pallas_src>
import functools
import math

import jax
import jax.numpy as jnp
from jax.experimental import pallas as pl
from jax.experimental.pallas import tpu as pltpu


# ---------------------------------------------------------------------------
# Kernel 1: 1x1 down-sample conv, whole batch in one grid-less matmul
# ---------------------------------------------------------------------------
def _conv1x1_kernel(x_ref, w_ref, b_ref, o_ref):
    # x_ref: (Cin, N*H*W) bf16, w_ref: (Cout, Cin) bf16, b_ref: (Cout, 1) f32
    y = jnp.dot(w_ref[...], x_ref[...], preferred_element_type=jnp.float32)
    o_ref[...] = (y + b_ref[...]).astype(o_ref.dtype)


def conv1x1(x_nchw, w, b):
    """1x1 conv: x (N,Cin,H,W), w (Cout,Cin), b (Cout,) -> (N,Cout,H,W) bf16."""
    N, Cin, H, W = x_nchw.shape
    Cout = w.shape[0]
    NHW = N * H * W
    # (N,Cin,H,W) -> (Cin, N*H*W): host-side layout plumbing (plain XLA).
    xt = jnp.transpose(x_nchw, (1, 0, 2, 3)).reshape(Cin, NHW).astype(jnp.bfloat16)
    wm = w.astype(jnp.bfloat16)
    bm = b.reshape(Cout, 1).astype(jnp.float32)
    cost = pl.CostEstimate(
        flops=2 * Cout * Cin * NHW, transcendentals=0,
        bytes_accessed=Cin * NHW * 2 + Cout * Cin * 2 + Cout * 4 + Cout * NHW * 2)
    y = pl.pallas_call(
        _conv1x1_kernel,
        out_shape=jax.ShapeDtypeStruct((Cout, NHW), jnp.bfloat16),
        in_specs=[pl.BlockSpec(memory_space=pltpu.MemorySpace.VMEM)] * 3,
        out_specs=pl.BlockSpec(memory_space=pltpu.MemorySpace.VMEM),
        cost_estimate=cost,
    )(xt, wm, bm)
    return jnp.transpose(y.reshape(Cout, N, H, W), (1, 0, 2, 3))


# ---------------------------------------------------------------------------
# Kernel 2: fused ROIAlign + fc6 + ReLU + fc7 + ReLU (single invocation)
# ---------------------------------------------------------------------------
def _roi_align_fc_kernel(idx_ref, slabs_ref, bt_ref, w6_ref, b6_ref, w7_ref,
                         b7_ref, o_ref, x_scratch, *, num_rois, num_channels,
                         pooled_sq):
    R, C, PP = num_rois, num_channels, pooled_sq
    # --- ROIAlign: ONE MXU matmul per ROI, all operands resident in VMEM ---
    # NOTE(v7x): at production shapes, reintroduce a size-2 "parallel" grid
    # axis over ROI halves so both TensorCores are used; single core is fine
    # at these tiny shapes.
    for r in range(R):                         # static unrolled loop (R small)
        feat = slabs_ref[idx_ref[r]]           # (C, Hmax*Wmax) bf16, dyn. slab
        bt = bt_ref[r]                         # (Hmax*Wmax, P*P) bf16
        pooled = jnp.dot(feat, bt, preferred_element_type=jnp.float32)
        pooled = pooled.astype(x_scratch.dtype)            # (C, P*P)
        # write row r of the flattened features in NCHW order: c*P*P+py*P+px
        for c in range(C):
            x_scratch[r:r + 1, c * PP:(c + 1) * PP] = pooled[c:c + 1, :]
    # --- fused fc6 + ReLU + fc7 + ReLU for the whole ROI batch ---
    x = x_scratch[...]                                      # (R, C*P*P) bf16
    h = jnp.dot(x, w6_ref[...], preferred_element_type=jnp.float32) + b6_ref[...]
    h = jnp.maximum(h, 0.0).astype(w7_ref.dtype)
    y = jnp.dot(h, w7_ref[...], preferred_element_type=jnp.float32) + b7_ref[...]
    o_ref[...] = jnp.maximum(y, 0.0)


def _axis_interp_matrix(start, bin_size, dim, max_dim, sr, P):
    """(P, max_dim) bilinear weights for one spatial axis of one ROI
    (maskrcnn-benchmark ROIAlign, aligned=False).  The 1/sr sample average and
    out-of-bounds validity mask are folded in; columns >= dim get zero weight
    so zero-padded feature slabs stay exact."""
    p = jnp.arange(P, dtype=jnp.float32)[:, None]                 # (P, 1)
    i = jnp.arange(sr, dtype=jnp.float32)[None, :]                # (1, sr)
    pos = start + p * bin_size + (i + 0.5) * bin_size / sr        # (P, sr)
    valid = (pos >= -1.0) & (pos <= dim)
    pos_c = jnp.maximum(pos, 0.0)
    lo_f = jnp.minimum(jnp.floor(pos_c), dim - 1.0)
    lo = lo_f.astype(jnp.int32)
    hi = jnp.minimum(lo + 1, (dim - 1.0).astype(jnp.int32))
    frac = pos_c - lo_f
    cols = jnp.arange(max_dim, dtype=jnp.int32)[None, None, :]    # (1,1,max_dim)
    m = ((1.0 - frac)[..., None] * (cols == lo[..., None]).astype(jnp.float32)
         + frac[..., None] * (cols == hi[..., None]).astype(jnp.float32))
    m = jnp.where(valid[..., None], m, 0.0)
    return m.sum(axis=1) * (1.0 / sr)                             # (P, max_dim)


def _map_levels(rois, scales, canonical_scale=224.0, canonical_level=4.0,
                eps=1e-6):
    k_min = -math.log2(scales[0])
    k_max = -math.log2(scales[-1])
    w = rois[:, 3] - rois[:, 1]
    h = rois[:, 4] - rois[:, 2]
    s = jnp.sqrt(w * h)
    lvl = jnp.floor(canonical_level + jnp.log2(s / canonical_scale + eps))
    lvl = jnp.clip(lvl, k_min, k_max)
    return (lvl - k_min).astype(jnp.int32)


def roi_align_fc_head(feats, rois, fc6, fc7, scales, pooled_size,
                      sampling_ratio):
    """ROIAlign over FPN levels + flatten + fc6/ReLU + fc7/ReLU, one kernel."""
    L = len(feats)
    N, C = feats[0].shape[:2]
    Hmax = max(f.shape[2] for f in feats)
    Wmax = max(f.shape[3] for f in feats)
    R = rois.shape[0]
    P, sr = pooled_size, sampling_ratio
    PP = P * P
    rep = fc6["w"].shape[1]
    out_dim = fc7["w"].shape[1]

    levels = _map_levels(rois, scales)                            # (R,)
    batch = rois[:, 0].astype(jnp.int32)
    slab_idx = (levels * N + batch).astype(jnp.int32)             # (R,) int32

    # (level,batch) feature slabs, zero-padded to (Hmax,Wmax) and flattened to
    # (C, Hmax*Wmax); padded rows/cols receive zero interpolation weight.
    slabs = jnp.stack(
        [jnp.pad(f.astype(jnp.bfloat16),
                 ((0, 0), (0, 0), (0, Hmax - f.shape[2]),
                  (0, Wmax - f.shape[3]))) for f in feats], axis=0)
    slabs = slabs.reshape(L * N, C, Hmax * Wmax)

    # TODO(synk): ROI-box -> interpolation-weight construction is tiny
    # per-ROI elementwise math; it stays in plain JAX and feeds the MXU kernel.
    scales_arr = jnp.asarray(scales, jnp.float32)                 # (L,)
    dims_arr = jnp.asarray([[f.shape[2], f.shape[3]] for f in feats],
                           jnp.float32)                           # (L, 2)

    def one_roi(roi, lvl):
        s = scales_arr[lvl]
        Hl, Wl = dims_arr[lvl, 0], dims_arr[lvl, 1]
        x1, y1, x2, y2 = roi[1] * s, roi[2] * s, roi[3] * s, roi[4] * s
        roi_w = jnp.maximum(x2 - x1, 1.0)
        roi_h = jnp.maximum(y2 - y1, 1.0)
        by = _axis_interp_matrix(y1, roi_h / P, Hl, Hmax, sr, P)   # (P, Hmax)
        bx = _axis_interp_matrix(x1, roi_w / P, Wl, Wmax, sr, P)   # (P, Wmax)
        return by, bx

    By, Bx = jax.vmap(one_roi)(rois, levels)        # (R,P,Hmax), (R,P,Wmax)
    # Separable outer-product weights: Bt[r, h*Wmax+w, py*P+px].
    Bt = jnp.einsum('rph,rqw->rhwpq', By, Bx).reshape(R, Hmax * Wmax, PP)
    Bt = Bt.astype(jnp.bfloat16)

    w6 = fc6["w"].astype(jnp.bfloat16)                    # (C*P*P, rep)
    b6 = fc6["b"].reshape(1, -1).astype(jnp.float32)
    w7 = fc7["w"].astype(jnp.bfloat16)                    # (rep, out_dim)
    b7 = fc7["b"].reshape(1, -1).astype(jnp.float32)

    flops = (2 * R * C * Hmax * Wmax * PP + 2 * R * C * PP * rep
             + 2 * R * rep * out_dim)
    bytes_accessed = (L * N * C * Hmax * Wmax * 2 + R * Hmax * Wmax * PP * 2
                      + C * PP * rep * 2 + rep * out_dim * 2
                      + (rep + out_dim) * 4 + R * 4 + R * out_dim * 4)

    kernel = functools.partial(_roi_align_fc_kernel, num_rois=R,
                               num_channels=C, pooled_sq=PP)
    return pl.pallas_call(
        kernel,
        out_shape=jax.ShapeDtypeStruct((R, out_dim), jnp.float32),
        in_specs=[pl.BlockSpec(memory_space=pltpu.MemorySpace.SMEM),   # idx
                  pl.BlockSpec(memory_space=pltpu.MemorySpace.VMEM),   # slabs
                  pl.BlockSpec(memory_space=pltpu.MemorySpace.VMEM),   # Bt
                  pl.BlockSpec(memory_space=pltpu.MemorySpace.VMEM),   # w6
                  pl.BlockSpec(memory_space=pltpu.MemorySpace.VMEM),   # b6
                  pl.BlockSpec(memory_space=pltpu.MemorySpace.VMEM),   # w7
                  pl.BlockSpec(memory_space=pltpu.MemorySpace.VMEM)],  # b7
        out_specs=pl.BlockSpec(memory_space=pltpu.MemorySpace.VMEM),
        scratch_shapes=[pltpu.VMEM((R, C * PP), jnp.bfloat16)],
        cost_estimate=pl.CostEstimate(flops=flops, transcendentals=0,
                                      bytes_accessed=bytes_accessed),
    )(slab_idx, slabs, Bt, w6, b6, w7, b7)


# ---------------------------------------------------------------------------
# Full module forward
# ---------------------------------------------------------------------------
def yolov8_feature_extractor_forward(feats, rois, params, cfg):
    # 1) per-level 1x1 down-sample conv (only where channel counts differ)
    feats = list(feats)
    for i, ds in enumerate(params["down_sample"]):
        if ds is not None:
            feats[i] = conv1x1(feats[i], ds["w"], ds["b"])
    # 2) fused ROIAlign + flatten + fc6/ReLU + fc7/ReLU
    return roi_align_fc_head(feats, rois, params["fc6"], params["fc7"],
                             cfg["scales"], cfg["resolution"],
                             cfg["sampling_ratio"])


# ---------------------------------------------------------------------------
# Deterministic parameter / input construction and smoke test
# ---------------------------------------------------------------------------
def _kaiming_uniform(key, shape, fan_in, a=1.0):
    gain = jnp.sqrt(2.0 / (1.0 + a * a))
    bound = gain * jnp.sqrt(3.0 / fan_in)
    return jax.random.uniform(key, shape, jnp.float32, -bound, bound)


if __name__ == "__main__":
    cfg = dict(
        in_channels=4,
        resolution=4,
        sampling_ratio=2,
        scales=(0.25, 0.125),
        mlp_head_dim=32,
        yolo_out_channels=(8, 4),
        half_out=False,
    )
    in_ch = cfg["in_channels"]
    res = cfg["resolution"]
    rep = cfg["mlp_head_dim"]
    input_size = in_ch * res * res            # 4 * 16 = 64
    out_dim = rep // 2 if cfg["half_out"] else rep

    key = jax.random.PRNGKey(0)
    keys = jax.random.split(key, 8)

    # Parameters (synthetic, deterministic)
    down_sample = []
    kidx = 0
    for cs in cfg["yolo_out_channels"]:
        if cs != in_ch:
            w = _kaiming_uniform(keys[kidx], (in_ch, cs), fan_in=cs)
            b = jnp.zeros((in_ch,), jnp.float32)
            down_sample.append({"w": w, "b": b})
        else:
            down_sample.append(None)
        kidx += 1
    params = {
        "down_sample": down_sample,
        "fc6": {"w": _kaiming_uniform(keys[4], (input_size, rep), input_size),
                "b": jnp.zeros((rep,), jnp.float32)},
        "fc7": {"w": _kaiming_uniform(keys[5], (rep, out_dim), rep),
                "b": jnp.zeros((out_dim,), jnp.float32)},
    }

    # Inputs: 2 FPN levels for a 64x64 image, batch=2 (NCHW)
    feat0 = jax.random.normal(keys[6], (2, 8, 16, 16), jnp.float32)  # 8->4 conv
    feat1 = jax.random.normal(keys[7], (2, 4, 8, 8), jnp.float32)    # already 4 ch
    feats = [feat0, feat1]

    # Proposals: (R, 5) = [batch_idx, x1, y1, x2, y2] in image (64x64) coords
    rois = jnp.array([
        [0.,  4.,  4., 36., 28.],
        [0., 10., 12., 50., 60.],
        [0.,  0.,  0., 20., 20.],
        [1.,  8.,  6., 40., 44.],
        [1., 16., 16., 60., 62.],
        [1.,  2., 30., 30., 58.],
    ], dtype=jnp.float32)

    fwd = jax.jit(lambda f, r: yolov8_feature_extractor_forward(f, r, params,
                                                                cfg))
    out = jax.block_until_ready(fwd(feats, rois))
    assert out.shape == (rois.shape[0], out_dim), out.shape
    print("KERNEL_OK")
</pallas_src>

<mosaic_0001>
module attributes {stable_mosaic.version = 11 : i64} {
  func.func @_conv1x1_kernel(%arg0: memref<8x512xbf16, #tpu.memory_space<vmem>>, %arg1: memref<4x8xbf16, #tpu.memory_space<vmem>>, %arg2: memref<4x1xf32, #tpu.memory_space<vmem>>, %arg3: memref<4x512xbf16, #tpu.memory_space<vmem>>) attributes {dimension_semantics = [], scalar_prefetch = 0 : i64, scratch_operands = 0 : i64, tpu.core_type = #tpu.core_type<tc>} {
    %c0 = arith.constant 0 : index
    %c0_0 = arith.constant 0 : index
    %0 = vector.load %arg1[%c0, %c0_0] : memref<4x8xbf16, #tpu.memory_space<vmem>>, vector<4x8xbf16>
    %c0_1 = arith.constant 0 : index
    %c0_2 = arith.constant 0 : index
    %1 = vector.load %arg0[%c0_1, %c0_2] : memref<8x512xbf16, #tpu.memory_space<vmem>>, vector<8x512xbf16>
    %cst = arith.constant dense<0.000000e+00> : vector<4x512xf32>
    %2 = tpu.matmul %0, %1, %cst {dimension_numbers = #tpu.dot_dimension_numbers<[1], [0], [0], [1], [0, 0, 1, 1], [], []>} : vector<4x8xbf16>, vector<8x512xbf16>, vector<4x512xf32> -> vector<4x512xf32>
    %c0_3 = arith.constant 0 : index
    %c0_4 = arith.constant 0 : index
    %3 = vector.load %arg2[%c0_3, %c0_4] : memref<4x1xf32, #tpu.memory_space<vmem>>, vector<4x1xf32>
    %4 = vector.broadcast %3 : vector<4x1xf32> to vector<4x512xf32>
    %5 = arith.addf %2, %4 : vector<4x512xf32>
    %6 = arith.truncf %5 : vector<4x512xf32> to vector<4x512xbf16>
    %c0_5 = arith.constant 0 : index
    %c0_6 = arith.constant 0 : index
    %7 = vector.load %arg3[%c0_5, %c0_6] : memref<4x512xbf16, #tpu.memory_space<vmem>>, vector<4x512xbf16>
    tpu.vector_store %arg3[%c0_5, %c0_6], %6 {strides = array<i32>} : memref<4x512xbf16, #tpu.memory_space<vmem>>, vector<4x512xbf16>,
    return
  }
}

module attributes {stable_mosaic.version = 11 : i64} {
  func.func @_roi_align_fc_kernel(%arg0: memref<6xi32, #tpu.memory_space<smem>>, %arg1: memref<4x4x256xbf16, #tpu.memory_space<vmem>>, %arg2: memref<6x256x16xbf16, #tpu.memory_space<vmem>>, %arg3: memref<64x32xbf16, #tpu.memory_space<vmem>>, %arg4: memref<1x32xf32, #tpu.memory_space<vmem>>, %arg5: memref<32x32xbf16, #tpu.memory_space<vmem>>, %arg6: memref<1x32xf32, #tpu.memory_space<vmem>>, %arg7: memref<6x32xf32, #tpu.memory_space<vmem>>, %arg8: memref<6x64xbf16, #tpu.memory_space<vmem>>) attributes {dimension_semantics = [], scalar_prefetch = 0 : i64, scratch_operands = 1 : i64, tpu.core_type = #tpu.core_type<tc>} {
    %c0 = arith.constant 0 : index
    %0 = memref.load %arg0[%c0] : memref<6xi32, #tpu.memory_space<smem>>
    %1 = arith.index_cast %0 : i32 to index
    %c0_0 = arith.constant 0 : index
    %c0_1 = arith.constant 0 : index
    %2 = vector.load %arg1[%1, %c0_0, %c0_1] : memref<4x4x256xbf16, #tpu.memory_space<vmem>>, vector<1x4x256xbf16>
    %3 = vector.shape_cast %2 : vector<1x4x256xbf16> to vector<4x256xbf16>
    %c0_2 = arith.constant 0 : index
    %c0_3 = arith.constant 0 : index
    %c0_4 = arith.constant 0 : index
    %4 = vector.load %arg2[%c0_2, %c0_3, %c0_4] : memref<6x256x16xbf16, #tpu.memory_space<vmem>>, vector<1x256x16xbf16>
    %5 = vector.shape_cast %4 : vector<1x256x16xbf16> to vector<256x16xbf16>
    %cst = arith.constant dense<0.000000e+00> : vector<4x16xf32>
    %6 = tpu.matmul %3, %5, %cst {dimension_numbers = #tpu.dot_dimension_numbers<[1], [0], [0], [1], [0, 0, 1, 1], [], []>} : vector<4x256xbf16>, vector<256x16xbf16>, vector<4x16xf32> -> vector<4x16xf32>
    %7 = arith.truncf %6 : vector<4x16xf32> to vector<4x16xbf16>
    %8 = vector.extract_strided_slice %7 {offsets = [0, 0], sizes = [1, 16], strides = [1, 1]} : vector<4x16xbf16> to vector<1x16xbf16>
    %c0_5 = arith.constant 0 : index
    %c0_6 = arith.constant 0 : index
    %9 = vector.load %arg8[%c0_5, %c0_6] : memref<6x64xbf16, #tpu.memory_space<vmem>>, vector<1x16xbf16>
    tpu.vector_store %arg8[%c0_5, %c0_6], %8 {strides = array<i32>} : memref<6x64xbf16, #tpu.memory_space<vmem>>, vector<1x16xbf16>,
    %10 = vector.extract_strided_slice %7 {offsets = [1, 0], sizes = [1, 16], strides = [1, 1]} : vector<4x16xbf16> to vector<1x16xbf16>
    %c0_7 = arith.constant 0 : index
    %c16 = arith.constant 16 : index
    %11 = vector.load %arg8[%c0_7, %c16] : memref<6x64xbf16, #tpu.memory_space<vmem>>, vector<1x16xbf16>
    tpu.vector_store %arg8[%c0_7, %c16], %10 {strides = array<i32>} : memref<6x64xbf16, #tpu.memory_space<vmem>>, vector<1x16xbf16>,
    %12 = vector.extract_strided_slice %7 {offsets = [2, 0], sizes = [1, 16], strides = [1, 1]} : vector<4x16xbf16> to vector<1x16xbf16>
    %c0_8 = arith.constant 0 : index
    %c32 = arith.constant 32 : index
    %13 = vector.load %arg8[%c0_8, %c32] : memref<6x64xbf16, #tpu.memory_space<vmem>>, vector<1x16xbf16>
    tpu.vector_store %arg8[%c0_8, %c32], %12 {strides = array<i32>} : memref<6x64xbf16, #tpu.memory_space<vmem>>, vector<1x16xbf16>,
    %14 = vector.extract_strided_slice %7 {offsets = [3, 0], sizes = [1, 16], strides = [1, 1]} : vector<4x16xbf16> to vector<1x16xbf16>
    %c0_9 = arith.constant 0 : index
    %c48 = arith.constant 48 : index
    %15 = vector.load %arg8[%c0_9, %c48] : memref<6x64xbf16, #tpu.memory_space<vmem>>, vector<1x16xbf16>
    tpu.vector_store %arg8[%c0_9, %c48], %14 {strides = array<i32>} : memref<6x64xbf16, #tpu.memory_space<vmem>>, vector<1x16xbf16>,
    %c1 = arith.constant 1 : index
    %16 = memref.load %arg0[%c1] : memref<6xi32, #tpu.memory_space<smem>>
    %17 = arith.index_cast %16 : i32 to index
    %c0_10 = arith.constant 0 : index
    %c0_11 = arith.constant 0 : index
    %18 = vector.load %arg1[%17, %c0_10, %c0_11] : memref<4x4x256xbf16, #tpu.memory_space<vmem>>, vector<1x4x256xbf16>
    %19 = vector.shape_cast %18 : vector<1x4x256xbf16> to vector<4x256xbf16>
    %c1_12 = arith.constant 1 : index
    %c0_13 = arith.constant 0 : index
    %c0_14 = arith.constant 0 : index
    %20 = vector.load %arg2[%c1_12, %c0_13, %c0_14] : memref<6x256x16xbf16, #tpu.memory_space<vmem>>, vector<1x256x16xbf16>
    %21 = vector.shape_cast %20 : vector<1x256x16xbf16> to vector<256x16xbf16>
    %cst_15 = arith.constant dense<0.000000e+00> : vector<4x16xf32>
    %22 = tpu.matmul %19, %21, %cst_15 {dimension_numbers = #tpu.dot_dimension_numbers<[1], [0], [0], [1], [0, 0, 1, 1], [], []>} : vector<4x256xbf16>, vector<256x16xbf16>, vector<4x16xf32> -> vector<4x16xf32>
    %23 = arith.truncf %22 : vector<4x16xf32> to vector<4x16xbf16>
    %24 = vector.extract_strided_slice %23 {offsets = [0, 0], sizes = [1, 16], strides = [1, 1]} : vector<4x16xbf16> to vector<1x16xbf16>
    %c1_16 = arith.constant 1 : index
    %c0_17 = arith.constant 0 : index
    %25 = vector.load %arg8[%c1_16, %c0_17] : memref<6x64xbf16, #tpu.memory_space<vmem>>, vector<1x16xbf16>
    tpu.vector_store %arg8[%c1_16, %c0_17], %24 {strides = array<i32>} : memref<6x64xbf16, #tpu.memory_space<vmem>>, vector<1x16xbf16>,
    %26 = vector.extract_strided_slice %23 {offsets = [1, 0], sizes = [1, 16], strides = [1, 1]} : vector<4x16xbf16> to vector<1x16xbf16>
    %c1_18 = arith.constant 1 : index
    %c16_19 = arith.constant 16 : index
    %27 = vector.load %arg8[%c1_18, %c16_19] : memref<6x64xbf16, #tpu.memory_space<vmem>>, vector<1x16xbf16>
    tpu.vector_store %arg8[%c1_18, %c16_19], %26 {strides = array<i32>} : memref<6x64xbf16, #tpu.memory_space<vmem>>, vector<1x16xbf16>,
    %28 = vector.extract_strided_slice %23 {offsets = [2, 0], sizes = [1, 16], strides = [1, 1]} : vector<4x16xbf16> to vector<1x16xbf16>
    %c1_20 = arith.constant 1 : index
    %c32_21 = arith.constant 32 : index
    %29 = vector.load %arg8[%c1_20, %c32_21] : memref<6x64xbf16, #tpu.memory_space<vmem>>, vector<1x16xbf16>
    tpu.vector_store %arg8[%c1_20, %c32_21], %28 {strides = array<i32>} : memref<6x64xbf16, #tpu.memory_space<vmem>>, vector<1x16xbf16>,
    %30 = vector.extract_strided_slice %23 {offsets = [3, 0], sizes = [1, 16], strides = [1, 1]} : vector<4x16xbf16> to vector<1x16xbf16>
    %c1_22 = arith.constant 1 : index
    %c48_23 = arith.constant 48 : index
    %31 = vector.load %arg8[%c1_22, %c48_23] : memref<6x64xbf16, #tpu.memory_space<vmem>>, vector<1x16xbf16>
    tpu.vector_store %arg8[%c1_22, %c48_23], %30 {strides = array<i32>} : memref<6x64xbf16, #tpu.memory_space<vmem>>, vector<1x16xbf16>,
    %c2 = arith.constant 2 : index
    %32 = memref.load %arg0[%c2] : memref<6xi32, #tpu.memory_space<smem>>
    %33 = arith.index_cast %32 : i32 to index
    %c0_24 = arith.constant 0 : index
    %c0_25 = arith.constant 0 : index
    %34 = vector.load %arg1[%33, %c0_24, %c0_25] : memref<4x4x256xbf16, #tpu.memory_space<vmem>>, vector<1x4x256xbf16>
    %35 = vector.shape_cast %34 : vector<1x4x256xbf16> to vector<4x256xbf16>
    %c2_26 = arith.constant 2 : index
    %c0_27 = arith.constant 0 : index
    %c0_28 = arith.constant 0 : index
    %36 = vector.load %arg2[%c2_26, %c0_27, %c0_28] : memref<6x256x16xbf16, #tpu.memory_space<vmem>>, vector<1x256x16xbf16>
    %37 = vector.shape_cast %36 : vector<1x256x16xbf16> to vector<256x16xbf16>
    %cst_29 = arith.constant dense<0.000000e+00> : vector<4x16xf32>
    %38 = tpu.matmul %35, %37, %cst_29 {dimension_numbers = #tpu.dot_dimension_numbers<[1], [0], [0], [1], [0, 0, 1, 1], [], []>} : vector<4x256xbf16>, vector<256x16xbf16>, vector<4x16xf32> -> vector<4x16xf32>
    %39 = arith.truncf %38 : vector<4x16xf32> to vector<4x16xbf16>
    %40 = vector.extract_strided_slice %39 {offsets = [0, 0], sizes = [1, 16], strides = [1, 1]} : vector<4x16xbf16> to vector<1x16xbf16>
    %c2_30 = arith.constant 2 : index
    %c0_31 = arith.constant 0 : index
    %41 = vector.load %arg8[%c2_30, %c0_31] : memref<6x64xbf16, #tpu.memory_space<vmem>>, vector<1x16xbf16>
    tpu.vector_store %arg8[%c2_30, %c0_31], %40 {strides = array<i32>} : memref<6x64xbf16, #tpu.memory_space<vmem>>, vector<1x16xbf16>,
    %42 = vector.extract_strided_slice %39 {offsets = [1, 0], sizes = [1, 16], strides = [1, 1]} : vector<4x16xbf16> to vector<1x16xbf16>
    %c2_32 = arith.constant 2 : index
    %c16_33 = arith.constant 16 : index
    %43 = vector.load %arg8[%c2_32, %c16_33] : memref<6x64xbf16, #tpu.memory_space<vmem>>, vector<1x16xbf16>
    tpu.vector_store %arg8[%c2_32, %c16_33], %42 {strides = array<i32>} : memref<6x64xbf16, #tpu.memory_space<vmem>>, vector<1x16xbf16>,
    %44 = vector.extract_strided_slice %39 {offsets = [2, 0], sizes = [1, 16], strides = [1, 1]} : vector<4x16xbf16> to vector<1x16xbf16>
    %c2_34 = arith.constant 2 : index
    %c32_35 = arith.constant 32 : index
    %45 = vector.load %arg8[%c2_34, %c32_35] : memref<6x64xbf16, #tpu.memory_space<vmem>>, vector<1x16xbf16>
    tpu.vector_store %arg8[%c2_34, %c32_35], %44 {strides = array<i32>} : memref<6x64xbf16, #tpu.memory_space<vmem>>, vector<1x16xbf16>,
    %46 = vector.extract_strided_slice %39 {offsets = [3, 0], sizes = [1, 16], strides = [1, 1]} : vector<4x16xbf16> to vector<1x16xbf16>
    %c2_36 = arith.constant 2 : index
    %c48_37 = arith.constant 48 : index
    %47 = vector.load %arg8[%c2_36, %c48_37] : memref<6x64xbf16, #tpu.memory_space<vmem>>, vector<1x16xbf16>
    tpu.vector_store %arg8[%c2_36, %c48_37], %46 {strides = array<i32>} : memref<6x64xbf16, #tpu.memory_space<vmem>>, vector<1x16xbf16>,
    %c3 = arith.constant 3 : index
    %48 = memref.load %arg0[%c3] : memref<6xi32, #tpu.memory_space<smem>>
    %49 = arith.index_cast %48 : i32 to index
    %c0_38 = arith.constant 0 : index
    %c0_39 = arith.constant 0 : index
    %50 = vector.load %arg1[%49, %c0_38, %c0_39] : memref<4x4x256xbf16, #tpu.memory_space<vmem>>, vector<1x4x256xbf16>
    %51 = vector.shape_cast %50 : vector<1x4x256xbf16> to vector<4x256xbf16>
    %c3_40 = arith.constant 3 : index
    %c0_41 = arith.constant 0 : index
    %c0_42 = arith.constant 0 : index
    %52 = vector.load %arg2[%c3_40, %c0_41, %c0_42] : memref<6x256x16xbf16, #tpu.memory_space<vmem>>, vector<1x256x16xbf16>
    %53 = vector.shape_cast %52 : vector<1x256x16xbf16> to vector<256x16xbf16>
    %cst_43 = arith.constant dense<0.000000e+00> : vector<4x16xf32>
    %54 = tpu.matmul %51, %53, %cst_43 {dimension_numbers = #tpu.dot_dimension_numbers<[1], [0], [0], [1], [0, 0, 1, 1], [], []>} : vector<4x256xbf16>, vector<256x16xbf16>, vector<4x16xf32> -> vector<4x16xf32>
    %55 = arith.truncf %54 : vector<4x16xf32> to vector<4x16xbf16>
    %56 = vector.extract_strided_slice %55 {offsets = [0, 0], sizes = [1, 16], strides = [1, 1]} : vector<4x16xbf16> to vector<1x16xbf16>
    %c3_44 = arith.constant 3 : index
    %c0_45 = arith.constant 0 : index
    %57 = vector.load %arg8[%c3_44, %c0_45] : memref<6x64xbf16, #tpu.memory_space<vmem>>, vector<1x16xbf16>
    tpu.vector_store %arg8[%c3_44, %c0_45], %56 {strides = array<i32>} : memref<6x64xbf16, #tpu.memory_space<vmem>>, vector<1x16xbf16>,
    %58 = vector.extract_strided_slice %55 {offsets = [1, 0], sizes = [1, 16], strides = [1, 1]} : vector<4x16xbf16> to vector<1x16xbf16>
    %c3_46 = arith.constant 3 : index
    %c16_47 = arith.constant 16 : index
    %59 = vector.load %arg8[%c3_46, %c16_47] : memref<6x64xbf16, #tpu.memory_space<vmem>>, vector<1x16xbf16>
    tpu.vector_store %arg8[%c3_46, %c16_47], %58 {strides = array<i32>} : memref<6x64xbf16, #tpu.memory_space<vmem>>, vector<1x16xbf16>,
    %60 = vector.extract_strided_slice %55 {offsets = [2, 0], sizes = [1, 16], strides = [1, 1]} : vector<4x16xbf16> to vector<1x16xbf16>
    %c3_48 = arith.constant 3 : index
    %c32_49 = arith.constant 32 : index
    %61 = vector.load %arg8[%c3_48, %c32_49] : memref<6x64xbf16, #tpu.memory_space<vmem>>, vector<1x16xbf16>
    tpu.vector_store %arg8[%c3_48, %c32_49], %60 {strides = array<i32>} : memref<6x64xbf16, #tpu.memory_space<vmem>>, vector<1x16xbf16>,
    %62 = vector.extract_strided_slice %55 {offsets = [3, 0], sizes = [1, 16], strides = [1, 1]} : vector<4x16xbf16> to vector<1x16xbf16>
    %c3_50 = arith.constant 3 : index
    %c48_51 = arith.constant 48 : index
    %63 = vector.load %arg8[%c3_50, %c48_51] : memref<6x64xbf16, #tpu.memory_space<vmem>>, vector<1x16xbf16>
    tpu.vector_store %arg8[%c3_50, %c48_51], %62 {strides = array<i32>} : memref<6x64xbf16, #tpu.memory_space<vmem>>, vector<1x16xbf16>,
    %c4 = arith.constant 4 : index
    %64 = memref.load %arg0[%c4] : memref<6xi32, #tpu.memory_space<smem>>
    %65 = arith.index_cast %64 : i32 to index
    %c0_52 = arith.constant 0 : index
    %c0_53 = arith.constant 0 : index
    %66 = vector.load %arg1[%65, %c0_52, %c0_53] : memref<4x4x256xbf16, #tpu.memory_space<vmem>>, vector<1x4x256xbf16>
    %67 = vector.shape_cast %66 : vector<1x4x256xbf16> to vector<4x256xbf16>
    %c4_54 = arith.constant 4 : index
    %c0_55 = arith.constant 0 : index
    %c0_56 = arith.constant 0 : index
    %68 = vector.load %arg2[%c4_54, %c0_55, %c0_56] : memref<6x256x16xbf16, #tpu.memory_space<vmem>>, vector<1x256x16xbf16>
    %69 = vector.shape_cast %68 : vector<1x256x16xbf16> to vector<256x16xbf16>
    %cst_57 = arith.constant dense<0.000000e+00> : vector<4x16xf32>
    %70 = tpu.matmul %67, %69, %cst_57 {dimension_numbers = #tpu.dot_dimension_numbers<[1], [0], [0], [1], [0, 0, 1, 1], [], []>} : vector<4x256xbf16>, vector<256x16xbf16>, vector<4x16xf32> -> vector<4x16xf32>
    %71 = arith.truncf %70 : vector<4x16xf32> to vector<4x16xbf16>
    %72 = vector.extract_strided_slice %71 {offsets = [0, 0], sizes = [1, 16], strides = [1, 1]} : vector<4x16xbf16> to vector<1x16xbf16>
    %c4_58 = arith.constant 4 : index
    %c0_59 = arith.constant 0 : index
    %73 = vector.load %arg8[%c4_58, %c0_59] : memref<6x64xbf16, #tpu.memory_space<vmem>>, vector<1x16xbf16>
    tpu.vector_store %arg8[%c4_58, %c0_59], %72 {strides = array<i32>} : memref<6x64xbf16, #tpu.memory_space<vmem>>, vector<1x16xbf16>,
    %74 = vector.extract_strided_slice %71 {offsets = [1, 0], sizes = [1, 16], strides = [1, 1]} : vector<4x16xbf16> to vector<1x16xbf16>
    %c4_60 = arith.constant 4 : index
    %c16_61 = arith.constant 16 : index
    %75 = vector.load %arg8[%c4_60, %c16_61] : memref<6x64xbf16, #tpu.memory_space<vmem>>, vector<1x16xbf16>
    tpu.vector_store %arg8[%c4_60, %c16_61], %74 {strides = array<i32>} : memref<6x64xbf16, #tpu.memory_space<vmem>>, vector<1x16xbf16>,
    %76 = vector.extract_strided_slice %71 {offsets = [2, 0], sizes = [1, 16], strides = [1, 1]} : vector<4x16xbf16> to vector<1x16xbf16>
    %c4_62 = arith.constant 4 : index
    %c32_63 = arith.constant 32 : index
    %77 = vector.load %arg8[%c4_62, %c32_63] : memref<6x64xbf16, #tpu.memory_space<vmem>>, vector<1x16xbf16>
    tpu.vector_store %arg8[%c4_62, %c32_63], %76 {strides = array<i32>} : memref<6x64xbf16, #tpu.memory_space<vmem>>, vector<1x16xbf16>,
    %78 = vector.extract_strided_slice %71 {offsets = [3, 0], sizes = [1, 16], strides = [1, 1]} : vector<4x16xbf16> to vector<1x16xbf16>
    %c4_64 = arith.constant 4 : index
    %c48_65 = arith.constant 48 : index
    %79 = vector.load %arg8[%c4_64, %c48_65] : memref<6x64xbf16, #tpu.memory_space<vmem>>, vector<1x16xbf16>
    tpu.vector_store %arg8[%c4_64, %c48_65], %78 {strides = array<i32>} : memref<6x64xbf16, #tpu.memory_space<vmem>>, vector<1x16xbf16>,
    %c5 = arith.constant 5 : index
    %80 = memref.load %arg0[%c5] : memref<6xi32, #tpu.memory_space<smem>>
    %81 = arith.index_cast %80 : i32 to index
    %c0_66 = arith.constant 0 : index
    %c0_67 = arith.constant 0 : index
    %82 = vector.load %arg1[%81, %c0_66, %c0_67] : memref<4x4x256xbf16, #tpu.memory_space<vmem>>, vector<1x4x256xbf16>
    %83 = vector.shape_cast %82 : vector<1x4x256xbf16> to vector<4x256xbf16>
    %c5_68 = arith.constant 5 : index
    %c0_69 = arith.constant 0 : index
    %c0_70 = arith.constant 0 : index
    %84 = vector.load %arg2[%c5_68, %c0_69, %c0_70] : memref<6x256x16xbf16, #tpu.memory_space<vmem>>, vector<1x256x16xbf16>
    %85 = vector.shape_cast %84 : vector<1x256x16xbf16> to vector<256x16xbf16>
    %cst_71 = arith.constant dense<0.000000e+00> : vector<4x16xf32>
    %86 = tpu.matmul %83, %85, %cst_71 {dimension_numbers = #tpu.dot_dimension_numbers<[1], [0], [0], [1], [0, 0, 1, 1], [], []>} : vector<4x256xbf16>, vector<256x16xbf16>, vector<4x16xf32> -> vector<4x16xf32>
    %87 = arith.truncf %86 : vector<4x16xf32> to vector<4x16xbf16>
    %88 = vector.extract_strided_slice %87 {offsets = [0, 0], sizes = [1, 16], strides = [1, 1]} : vector<4x16xbf16> to vector<1x16xbf16>
    %c5_72 = arith.constant 5 : index
    %c0_73 = arith.constant 0 : index
    %89 = vector.load %arg8[%c5_72, %c0_73] : memref<6x64xbf16, #tpu.memory_space<vmem>>, vector<1x16xbf16>
    tpu.vector_store %arg8[%c5_72, %c0_73], %88 {strides = array<i32>} : memref<6x64xbf16, #tpu.memory_space<vmem>>, vector<1x16xbf16>,
    %90 = vector.extract_strided_slice %87 {offsets = [1, 0], sizes = [1, 16], strides = [1, 1]} : vector<4x16xbf16> to vector<1x16xbf16>
    %c5_74 = arith.constant 5 : index
    %c16_75 = arith.constant 16 : index
    %91 = vector.load %arg8[%c5_74, %c16_75] : memref<6x64xbf16, #tpu.memory_space<vmem>>, vector<1x16xbf16>
    tpu.vector_store %arg8[%c5_74, %c16_75], %90 {strides = array<i32>} : memref<6x64xbf16, #tpu.memory_space<vmem>>, vector<1x16xbf16>,
    %92 = vector.extract_strided_slice %87 {offsets = [2, 0], sizes = [1, 16], strides = [1, 1]} : vector<4x16xbf16> to vector<1x16xbf16>
    %c5_76 = arith.constant 5 : index
    %c32_77 = arith.constant 32 : index
    %93 = vector.load %arg8[%c5_76, %c32_77] : memref<6x64xbf16, #tpu.memory_space<vmem>>, vector<1x16xbf16>
    tpu.vector_store %arg8[%c5_76, %c32_77], %92 {strides = array<i32>} : memref<6x64xbf16, #tpu.memory_space<vmem>>, vector<1x16xbf16>,
    %94 = vector.extract_strided_slice %87 {offsets = [3, 0], sizes = [1, 16], strides = [1, 1]} : vector<4x16xbf16> to vector<1x16xbf16>
    %c5_78 = arith.constant 5 : index
    %c48_79 = arith.constant 48 : index
    %95 = vector.load %arg8[%c5_78, %c48_79] : memref<6x64xbf16, #tpu.memory_space<vmem>>, vector<1x16xbf16>
    tpu.vector_store %arg8[%c5_78, %c48_79], %94 {strides = array<i32>} : memref<6x64xbf16, #tpu.memory_space<vmem>>, vector<1x16xbf16>,
    %c0_80 = arith.constant 0 : index
    %c0_81 = arith.constant 0 : index
    %96 = vector.load %arg8[%c0_80, %c0_81] : memref<6x64xbf16, #tpu.memory_space<vmem>>, vector<6x64xbf16>
    %c0_82 = arith.constant 0 : index
    %c0_83 = arith.constant 0 : index
    %97 = vector.load %arg3[%c0_82, %c0_83] : memref<64x32xbf16, #tpu.memory_space<vmem>>, vector<64x32xbf16>
    %cst_84 = arith.constant dense<0.000000e+00> : vector<6x32xf32>
    %98 = tpu.matmul %96, %97, %cst_84 {dimension_numbers = #tpu.dot_dimension_numbers<[1], [0], [0], [1], [0, 0, 1, 1], [], []>} : vector<6x64xbf16>, vector<64x32xbf16>, vector<6x32xf32> -> vector<6x32xf32>
    %c0_85 = arith.constant 0 : index
    %c0_86 = arith.constant 0 : index
    %99 = vector.load %arg4[%c0_85, %c0_86] : memref<1x32xf32, #tpu.memory_space<vmem>>, vector<1x32xf32>
    %100 = vector.broadcast %99 : vector<1x32xf32> to vector<6x32xf32>
    %101 = arith.addf %98, %100 : vector<6x32xf32>
    %cst_87 = arith.constant 0.000000e+00 : f32
    %102 = vector.broadcast %cst_87 : f32 to vector<6x32xf32>
    %103 = arith.maximumf %101, %102 : vector<6x32xf32>
    %104 = arith.truncf %103 : vector<6x32xf32> to vector<6x32xbf16>
    %c0_88 = arith.constant 0 : index
    %c0_89 = arith.constant 0 : index
    %105 = vector.load %arg5[%c0_88, %c0_89] : memref<32x32xbf16, #tpu.memory_space<vmem>>, vector<32x32xbf16>
    %cst_90 = arith.constant dense<0.000000e+00> : vector<6x32xf32>
    %106 = tpu.matmul %104, %105, %cst_90 {dimension_numbers = #tpu.dot_dimension_numbers<[1], [0], [0], [1], [0, 0, 1, 1], [], []>} : vector<6x32xbf16>, vector<32x32xbf16>, vector<6x32xf32> -> vector<6x32xf32>
    %c0_91 = arith.constant 0 : index
    %c0_92 = arith.constant 0 : index
    %107 = vector.load %arg6[%c0_91, %c0_92] : memref<1x32xf32, #tpu.memory_space<vmem>>, vector<1x32xf32>
    %108 = vector.broadcast %107 : vector<1x32xf32> to vector<6x32xf32>
    %109 = arith.addf %106, %108 : vector<6x32xf32>
    %cst_93 = arith.constant 0.000000e+00 : f32
    %110 = vector.broadcast %cst_93 : f32 to vector<6x32xf32>
    %111 = arith.maximumf %109, %110 : vector<6x32xf32>
    %c0_94 = arith.constant 0 : index
    %c0_95 = arith.constant 0 : index
    %112 = vector.load %arg7[%c0_94, %c0_95] : memref<6x32xf32, #tpu.memory_space<vmem>>, vector<6x32xf32>
    tpu.vector_store %arg7[%c0_94, %c0_95], %111 {strides = array<i32>} : memref<6x32xf32, #tpu.memory_space<vmem>>, vector<6x32xf32>,
    return
  }
}

</mosaic_0001>

<llo_original>
// kernel: _lambda_.2
$region0: #{_lambda_.2}
  #allocation0 [shape = 'u32[]', space=smem, size = 0x4, offset = 0x4, fixed_abs, tag = 'smem constant byte address 0x4 - core index']
  #allocation1 [shape = 'u32[144,128]{1,0:T(1,128)}', space=vmem, size = 0x12000, scoped, tag = 'internal scratch']
  %s0 = inlined_call_operand.vmem [shape: bf16[8,512], index: 0, kind: input, shape index: {}]
  %s1 = inlined_call_operand.vmem [shape: bf16[4,8], index: 1, kind: input, shape index: {}]
  %s2 = inlined_call_operand.vmem [shape: f32[4,1], index: 2, kind: input, shape index: {}]
  %s3 = inlined_call_operand.vmem [shape: bf16[4,512], index: 3, kind: output, shape index: {}]
  %s4 = sld [smem:[#allocation0]]
  $region22: #{_lambda_.2} parent=0
    _
  %s6 = ssub.s32 1, %s4
  %s7 = scalar_select 0, %s6, %s4
  // Predicated region
  $region2: #{_lambda_.2} parent=0 // pred_check
    _
  $region3: #{_lambda_.2} parent=0 // pred_check_branch
    %9 = sbr.rel (0) target = $region5
  $region4: #{_lambda_.2} parent=0 // pred_region
    _
  $region5: #{_lambda_.2} parent=0 // pred_fallthru
    _
  // Predicated region
  $region6: #{_lambda_.2} parent=0 // pred_check
    _
  $region7: #{_lambda_.2} parent=0 // pred_check_branch
    %11 = sbr.rel (0) target = $region9
  $region8: #{_lambda_.2} parent=0 // pred_region
    _
  $region9: #{_lambda_.2} parent=0 // pred_fallthru
    _
  // Predicated region
  $region10: #{_lambda_.2} parent=0 // pred_check
    _
  $region11: #{_lambda_.2} parent=0 // pred_check_branch
    %13 = sbr.rel (0) target = $region13
  $region12: #{_lambda_.2} parent=0 // pred_region
    _
  $region13: #{_lambda_.2} parent=0 // pred_fallthru
    _
  %v15 = vld [vmem:[%s1] sm:$0x3]
  %v16 = vld [vmem:[%s0] sm:$0xff]
  %v17 = vld [vmem:[%s0 + $0x8] sm:$0xff]
  %v18 = vld [vmem:[%s2] sm:$0xf]
  %20 = vset.pattern.permute.xlu0 0
  %21 = vperm.xlu0 %20, %v18
  %v22 = vpop.permute.xlu0 %21
  %v26 = vunpack.c.l.b16 %v16
  %v27 = vunpack.c.h.b16 %v16
  %v28 = vunpack.c.l.b16 %v17
  %v29 = vunpack.c.h.b16 %v17
  %v30 = vpack.c.b16 %v26, %v26
  %v31 = vpack.c.b16 %v27, %v27
  %v32 = vpack.c.b16 %v28, %v28
  %v33 = vpack.c.b16 %v29, %v29
  %vm34 = vcmask 64512
  %v36 = vsel %vm34, %v15, 0
  %vm38 = vcmask 1043456
  %v40 = vsel %vm38, %v30, 0
  %v43 = vsel %vm38, %v31, 0
  %v46 = vsel %vm38, %v32, 0
  %v49 = vsel %vm38, %v33, 0
  %51 = vmatprep.subr.bf16.mxu0 %v43
  %52 = vmatpush1.bf16.msra.mxu0 %v40
  %53 = vmatprep.subr.bf16.mxu0 0
  %54 = vmatpush1.bf16.msra.mxu0 0
  %55 = vmatprep.subr.bf16.mxu0 0
  %56 = vmatpush1.bf16.msra.mxu0 0
  %57 = vmatprep.subr.bf16.mxu0 0
  %58 = vmatpush1.bf16.msra.mxu0 0
  %59 = vmatprep.subr.bf16.mxu0 0
  %60 = vmatpush1.bf16.msra.mxu0 0
  %61 = vmatprep.subr.bf16.mxu0 0
  %62 = vmatpush1.bf16.msra.mxu0 0
  %63 = vmatprep.subr.bf16.mxu0 0
  %64 = vmatpush1.bf16.msra.mxu0 0
  %65 = vmatprep.subr.bf16.mxu0 0
  %66 = vmatpush1.bf16.msra.mxu0 0
  %67 = vmatprep.subr.bf16.mxu0 0
  %68 = vmatpush1.bf16.msra.mxu0 0
  %69 = vmatprep.subr.bf16.mxu0 0
  %70 = vmatpush1.bf16.msra.mxu0 0
  %71 = vmatprep.subr.bf16.mxu0 0
  %72 = vmatpush1.bf16.msra.mxu0 0
  %73 = vmatprep.subr.bf16.mxu0 0
  %74 = vmatpush1.bf16.msra.mxu0 0
  %75 = vmatprep.subr.bf16.mxu0 0
  %76 = vmatpush1.bf16.msra.mxu0 0
  %77 = vmatprep.subr.bf16.mxu0 0
  %78 = vmatpush1.bf16.msra.mxu0 0
  %79 = vmatprep.subr.bf16.mxu0 0
  %80 = vmatpush1.bf16.msra.mxu0 0
  %81 = vmatprep.subr.bf16.mxu0 0
  %82 = vmatpush1.bf16.msra.mxu0 0
  %83 = vmatprep.mubr.bf16.mxu0 0
  %84 = vmatmul.mubr.bf16.gmra.mrb[0].mxu0 %v36
  %v85 = vpop.f32.mrb[0].mxu0
  %v86 = vadd.f32 %v22, %v85
  %v87 = vpop.f32.mrb[0].mxu0
  %v88 = vadd.f32 %v22, %v87
  %v89 = vpop.f32.mrb[0].mxu0
  %v90 = vpop.f32.mrb[0].mxu0
  %91 = vdwg.mxu0
  %92 = vmatprep.subr.bf16.mxu0 %v49
  %93 = vmatpush1.bf16.msra.mxu0 %v46
  %94 = vmatprep.subr.bf16.mxu0 0
  %95 = vmatpush1.bf16.msra.mxu0 0
  %96 = vmatprep.subr.bf16.mxu0 0
  %97 = vmatpush1.bf16.msra.mxu0 0
  %98 = vmatprep.subr.bf16.mxu0 0
  %99 = vmatpush1.bf16.msra.mxu0 0
  %100 = vmatprep.subr.bf16.mxu0 0
  %101 = vmatpush1.bf16.msra.mxu0 0
  %102 = vmatprep.subr.bf16.mxu0 0
  %103 = vmatpush1.bf16.msra.mxu0 0
  %104 = vmatprep.subr.bf16.mxu0 0
  %105 = vmatpush1.bf16.msra.mxu0 0
  %106 = vmatprep.subr.bf16.mxu0 0
  %107 = vmatpush1.bf16.msra.mxu0 0
  %108 = vmatprep.subr.bf16.mxu0 0
  %109 = vmatpush1.bf16.msra.mxu0 0
  %110 = vmatprep.subr.bf16.mxu0 0
  %111 = vmatpush1.bf16.msra.mxu0 0
  %112 = vmatprep.subr.bf16.mxu0 0
  %113 = vmatpush1.bf16.msra.mxu0 0
  %114 = vmatprep.subr.bf16.mxu0 0
  %115 = vmatpush1.bf16.msra.mxu0 0
  %116 = vmatprep.subr.bf16.mxu0 0
  %117 = vmatpush1.bf16.msra.mxu0 0
  %118 = vmatprep.subr.bf16.mxu0 0
  %119 = vmatpush1.bf16.msra.mxu0 0
  %120 = vmatprep.subr.bf16.mxu0 0
  %121 = vmatpush1.bf16.msra.mxu0 0
  %122 = vmatprep.subr.bf16.mxu0 0
  %123 = vmatpush1.bf16.msra.mxu0 0
  %124 = vmatprep.mubr.bf16.mxu0 0
  %125 = vmatmul.mubr.bf16.gmra.mrb[0].mxu0 %v36
  %v126 = vpop.f32.mrb[0].mxu0
  %v127 = vadd.f32 %v22, %v126
  %v128 = vpop.f32.mrb[0].mxu0
  %v129 = vadd.f32 %v22, %v128
  %v130 = vpop.f32.mrb[0].mxu0
  %v131 = vpop.f32.mrb[0].mxu0
  %132 = vdwg.mxu0
  %v133 = vpack.c.bf16 %v86, %v86
  %v134 = vpack.c.bf16 %v88, %v88
  %v135 = vpack.c.bf16 %v127, %v127
  %v136 = vpack.c.bf16 %v129, %v129
  %v141 = vcombine.low %v133, %v134
  %v142 = vcombine.low %v135, %v136
  %v144 = vunpack.c.l.s4 1983009808
  %v145 = vunpack.c.0.s8 %v144
  %v146 = vlaneseq
  %v147 = vshrl.u32 %v146, 7
  %v148 = vsub.s32 %v145, %v147
  %v149 = vrot.slane %v141, %v148
  %v151 = vunpack.c.l.s4 1983009808
  %v152 = vunpack.c.0.s8 %v151
  %v153 = vlaneseq
  %v154 = vshrl.u32 %v153, 7
  %v155 = vsub.s32 %v152, %v154
  %v156 = vrot.slane %v142, %v155
  %v157 = vcombine.low %v149, %v156
  %159 = vst [vmem:[%s3] sm:$0xff] %v157
  // Predicated region
  $region14: #{_lambda_.2} parent=0 // pred_check
    _
  $region15: #{_lambda_.2} parent=0 // pred_check_branch
    %161 = sbr.rel (0) target = $region17
  $region16: #{_lambda_.2} parent=0 // pred_region
    _
  $region17: #{_lambda_.2} parent=0 // pred_fallthru
    _
  // Predicated region
  $region18: #{_lambda_.2} parent=0 // pred_check
    _
  $region19: #{_lambda_.2} parent=0 // pred_check_branch
    %163 = sbr.rel (0) target = $region21
  $region20: #{_lambda_.2} parent=0 // pred_region
    _
  $region21: #{_lambda_.2} parent=0 // pred_fallthru
    _

// kernel: _lambda_.3
$region0: #{_lambda_.3}
  #allocation0 [shape = 'u32[]', space=smem, size = 0x4, offset = 0x4, fixed_abs, tag = 'smem constant byte address 0x4 - core index']
  #allocation1 [shape = 'u32[144,128]{1,0:T(1,128)}', space=vmem, size = 0x12000, scoped, tag = 'internal scratch']
  #allocation2 [shape = 'bf16[6,64]{1,0:T(8,128)(2,1)}', space=vmem, size = 0x800, scoped, tag = 'scratch operand']
  %s0 = inlined_call_operand.vmem [shape: s32[6], index: 0, kind: input, shape index: {}]
  %s1 = inlined_call_operand.vmem [shape: bf16[4,4,256], index: 1, kind: input, shape index: {}]
  %s2 = inlined_call_operand.vmem [shape: bf16[6,256,16], index: 2, kind: input, shape index: {}]
  %s3 = inlined_call_operand.vmem [shape: bf16[64,32], index: 3, kind: input, shape index: {}]
  %s4 = inlined_call_operand.vmem [shape: f32[1,32], index: 4, kind: input, shape index: {}, may-alias: {4,6}]
  %s5 = inlined_call_operand.vmem [shape: bf16[32,32], index: 5, kind: input, shape index: {}]
  %s6 = inlined_call_operand.vmem [shape: f32[1,32], index: 6, kind: input, shape index: {}, may-alias: {4,6}]
  %s7 = inlined_call_operand.hbm [shape: f32[6,32], index: 7, kind: output, shape index: {}]
  %s8 = sld [smem:[#allocation0]]
  $region42: #{_lambda_.3} parent=0
    _
  %s10 = ssub.s32 1, %s8
  %s11 = scalar_select 0, %s10, %s8
  $region1: #{_lambda_.3} parent=0
    #allocation3 [shape = 'u8[512]{0}', space=smem, size = 0x200, scoped, tag = 'input window, operand 0, single buffered']
    #allocation4 [shape = 's32[1]{0}', space=sflag, size = 0x4, scoped, tag = 'scoped memory for _lambda_.3']
    #allocation5 [shape = 's32[1]{0}', space=sflag, size = 0x4, scoped, tag = 'scoped memory for _lambda_.3']
    #allocation6 [shape = 'u8[4096]{0}', space=vmem, size = 0x1000, scoped, tag = 'output window, operand 0, single buffered']
    %12 = vsyncpa [#allocation5], 0
    %13 = vsyncpa [#allocation4], 0
    // Predicated region
    $region2: #{_lambda_.3} parent=1 // pred_check
      _
    $region3: #{_lambda_.3} parent=1 // pred_check_branch
      %15 = sbr.rel (0) target = $region5
    $region4: #{_lambda_.3} parent=1 // pred_region
      %s17 = ssub.s32 16, 16
      %18 = vsyncadd [#allocation5], %s17
      %s20 = sshll.u32 %s0, 4
      %s21 = int_to_ptr.vmem [resolvable:$true] %s20
      %23 = dma.vmem_to_smem %s21, 16, [#allocation3], [#allocation5]
    $region5: #{_lambda_.3} parent=1 // pred_fallthru
      _
    // Predicated region
    $region6: #{_lambda_.3} parent=1 // pred_check
      _
    $region7: #{_lambda_.3} parent=1 // pred_check_branch
      %25 = sbr.rel (0) target = $region9
    $region8: #{_lambda_.3} parent=1 // pred_region
      _
    $region9: #{_lambda_.3} parent=1 // pred_fallthru
      _
    // Predicated region
    $region10: #{_lambda_.3} parent=1 // pred_check
      _
    $region11: #{_lambda_.3} parent=1 // pred_check_branch
      %27 = sbr.rel (0) target = $region13
    $region12: #{_lambda_.3} parent=1 // pred_region
      _
    $region13: #{_lambda_.3} parent=1 // pred_fallthru
      _
    // Predicated region
    $region14: #{_lambda_.3} parent=1 // pred_check
      _
    $region15: #{_lambda_.3} parent=1 // pred_check_branch
      %29 = sbr.rel (0) target = $region17
    $region16: #{_lambda_.3} parent=1 // pred_region
      _
    $region17: #{_lambda_.3} parent=1 // pred_fallthru
      _
    // Predicated region
    $region18: #{_lambda_.3} parent=1 // pred_check
      _
    $region19: #{_lambda_.3} parent=1 // pred_check_branch
      %31 = sbr.rel (0) target = $region21
    $region20: #{_lambda_.3} parent=1 // pred_region
      _
    $region21: #{_lambda_.3} parent=1 // pred_fallthru
      _
    // Predicated region
    $region22: #{_lambda_.3} parent=1 // pred_check
      _
    $region23: #{_lambda_.3} parent=1 // pred_check_branch
      %33 = sbr.rel (0) target = $region25
    $region24: #{_lambda_.3} parent=1 // pred_region
      _
    $region25: #{_lambda_.3} parent=1 // pred_fallthru
      _
    // Predicated region
    $region26: #{_lambda_.3} parent=1 // pred_check
      _
    $region27: #{_lambda_.3} parent=1 // pred_check_branch
      %35 = sbr.rel (0) target = $region29
    $region28: #{_lambda_.3} parent=1 // pred_region
      _
    $region29: #{_lambda_.3} parent=1 // pred_fallthru
      _
    // Predicated region
    $region30: #{_lambda_.3} parent=1 // pred_check
      _
    $region31: #{_lambda_.3} parent=1 // pred_check_branch
      %37 = sbr.rel (0) target = $region33
    $region32: #{_lambda_.3} parent=1 // pred_region
      %38 = dma.done [#allocation5], 16
    $region33: #{_lambda_.3} parent=1 // pred_fallthru
      _
    %39 = sfence
    %s41 = sld [smem:[#allocation3]]
    %s42 = smul.u32 %s41, 2
    %s43 = smul.addr %s42, 2
    %s44 = scalar_lea.vmem %s1, %s43
    %v45 = vld [vmem:[%s44] sm:$0xf]
    %v46 = vld [vmem:[%s2] sm:$0xf]
    %v47 = vld [vmem:[%s2 + $0x4] sm:$0xf]
    %v48 = vld [vmem:[%s2 + $0x8] sm:$0xf]
    %v49 = vld [vmem:[%s2 + $0xc] sm:$0xf]
    %v50 = vld [vmem:[%s2 + $0x10] sm:$0xf]
    %v51 = vld [vmem:[%s2 + $0x14] sm:$0xf]
    %v52 = vld [vmem:[%s2 + $0x18] sm:$0xf]
    %v53 = vld [vmem:[%s2 + $0x1c] sm:$0xf]
    %v54 = vld [vmem:[%s2 + $0x20] sm:$0xf]
    %v55 = vld [vmem:[%s2 + $0x24] sm:$0xf]
    %v56 = vld [vmem:[%s2 + $0x28] sm:$0xf]
    %v57 = vld [vmem:[%s2 + $0x2c] sm:$0xf]
    %v58 = vld [vmem:[%s2 + $0x30] sm:$0xf]
    %v59 = vld [vmem:[%s2 + $0x34] sm:$0xf]
    %v60 = vld [vmem:[%s2 + $0x38] sm:$0xf]
    %v61 = vld [vmem:[%s2 + $0x3c] sm:$0xf]
    %v62 = vld [vmem:[%s2 + $0x40] sm:$0xf]
    %v63 = vld [vmem:[%s2 + $0x44] sm:$0xf]
    %v64 = vld [vmem:[%s2 + $0x48] sm:$0xf]
    %v65 = vld [vmem:[%s2 + $0x4c] sm:$0xf]
    %v66 = vld [vmem:[%s2 + $0x50] sm:$0xf]
    %v67 = vld [vmem:[%s2 + $0x54] sm:$0xf]
    %v68 = vld [vmem:[%s2 + $0x58] sm:$0xf]
    %v69 = vld [vmem:[%s2 + $0x5c] sm:$0xf]
    %v70 = vld [vmem:[%s2 + $0x60] sm:$0xf]
    %v71 = vld [vmem:[%s2 + $0x64] sm:$0xf]
    %v72 = vld [vmem:[%s2 + $0x68] sm:$0xf]
    %v73 = vld [vmem:[%s2 + $0x6c] sm:$0xf]
    %v74 = vld [vmem:[%s2 + $0x70] sm:$0xf]
    %v75 = vld [vmem:[%s2 + $0x74] sm:$0xf]
    %v76 = vld [vmem:[%s2 + $0x78] sm:$0xf]
    %v77 = vld [vmem:[%s2 + $0x7c] sm:$0xf]
    %v80 = vunpack.c.l.s4 1983009808
    %v81 = vunpack.c.0.s8 %v80
    %v82 = vlaneseq
    %v83 = vshrl.u32 %v82, 7
    %v84 = vsub.s32 %v81, %v83
    %v85 = vrot.slane %v45, %v84
    %v86 = vcombine.high %v85, %v85
    %v121 = vunpack.c.l.b16 %v46
    %v122 = vunpack.c.l.b16 %v47
    %v123 = vunpack.c.l.b16 %v48
    %v124 = vunpack.c.l.b16 %v49
    %v125 = vunpack.c.l.b16 %v50
    %v126 = vunpack.c.l.b16 %v51
    %v127 = vunpack.c.l.b16 %v52
    %v128 = vunpack.c.l.b16 %v53
    %v129 = vunpack.c.l.b16 %v54
    %v130 = vunpack.c.l.b16 %v55
    %v131 = vunpack.c.l.b16 %v56
    %v132 = vunpack.c.l.b16 %v57
    %v133 = vunpack.c.l.b16 %v58
    %v134 = vunpack.c.l.b16 %v59
    %v135 = vunpack.c.l.b16 %v60
    %v136 = vunpack.c.l.b16 %v61
    %v137 = vunpack.c.l.b16 %v62
    %v138 = vunpack.c.l.b16 %v63
    %v139 = vunpack.c.l.b16 %v64
    %v140 = vunpack.c.l.b16 %v65
    %v141 = vunpack.c.l.b16 %v66
    %v142 = vunpack.c.l.b16 %v67
    %v143 = vunpack.c.l.b16 %v68
    %v144 = vunpack.c.l.b16 %v69
    %v145 = vunpack.c.l.b16 %v70
    %v146 = vunpack.c.l.b16 %v71
    %v147 = vunpack.c.l.b16 %v72
    %v148 = vunpack.c.l.b16 %v73
    %v149 = vunpack.c.l.b16 %v74
    %v150 = vunpack.c.l.b16 %v75
    %v151 = vunpack.c.l.b16 %v76
    %v152 = vunpack.c.l.b16 %v77
    %v153 = vpack.c.b16 %v122, %v121
    %v154 = vpack.c.b16 %v124, %v123
    %v155 = vpack.c.b16 %v126, %v125
    %v156 = vpack.c.b16 %v128, %v127
    %v157 = vpack.c.b16 %v130, %v129
    %v158 = vpack.c.b16 %v132, %v131
    %v159 = vpack.c.b16 %v134, %v133
    %v160 = vpack.c.b16 %v136, %v135
    %v161 = vpack.c.b16 %v138, %v137
    %v162 = vpack.c.b16 %v140, %v139
    %v163 = vpack.c.b16 %v142, %v141
    %v164 = vpack.c.b16 %v144, %v143
    %v165 = vpack.c.b16 %v146, %v145
    %v166 = vpack.c.b16 %v148, %v147
    %v167 = vpack.c.b16 %v150, %v149
    %v168 = vpack.c.b16 %v152, %v151
    %185 = vmatprep.subr.bf16.mxu0 0
    %186 = vmatpush1.bf16.msra.mxu0 %v153
    %187 = vmatprep.subr.bf16.mxu0 0
    %188 = vmatpush1.bf16.msra.mxu0 %v154
    %189 = vmatprep.subr.bf16.mxu0 0
    %190 = vmatpush1.bf16.msra.mxu0 %v155
    %191 = vmatprep.subr.bf16.mxu0 0
    %192 = vmatpush1.bf16.msra.mxu0 %v156
    %193 = vmatprep.subr.bf16.mxu0 0
    %194 = vmatpush1.bf16.msra.mxu0 %v157
    %195 = vmatprep.subr.bf16.mxu0 0
    %196 = vmatpush1.bf16.msra.mxu0 %v158
    %197 = vmatprep.subr.bf16.mxu0 0
    %198 = vmatpush1.bf16.msra.mxu0 %v159
    %199 = vmatprep.subr.bf16.mxu0 0
    %200 = vmatpush1.bf16.msra.mxu0 %v160
    %201 = vmatprep.subr.bf16.mxu0 0
    %202 = vmatpush1.bf16.msra.mxu0 %v161
    %203 = vmatprep.subr.bf16.mxu0 0
    %204 = vmatpush1.bf16.msra.mxu0 %v162
    %205 = vmatprep.subr.bf16.mxu0 0
    %206 = vmatpush1.bf16.msra.mxu0 %v163
    %207 = vmatprep.subr.bf16.mxu0 0
    %208 = vmatpush1.bf16.msra.mxu0 %v164
    %209 = vmatprep.subr.bf16.mxu0 0
    %210 = vmatpush1.bf16.msra.mxu0 %v165
    %211 = vmatprep.subr.bf16.mxu0 0
    %212 = vmatpush1.bf16.msra.mxu0 %v166
    %213 = vmatprep.subr.bf16.mxu0 0
    %214 = vmatpush1.bf16.msra.mxu0 %v167
    %215 = vmatprep.subr.bf16.mxu0 0
    %216 = vmatpush1.bf16.msra.mxu0 %v168
    %217 = vmatprep.mubr.bf16.mxu0 %v86
    %218 = vmatmul.mubr.bf16.gmra.mrb[0].mxu0 %v85
    %v219 = vpop.f32.mrb[0].mxu0
    %v220 = vadd.f32 0.0, %v219
    %v221 = vpop.f32.mrb[0].mxu0
    %v222 = vpop.f32.mrb[0].mxu0
    %v223 = vpop.f32.mrb[0].mxu0
    %224 = vdwg.mxu0
    %v225 = vpack.c.bf16 %v220, %v220
    %vm226 = vcmask 122880
    %vm227 = vsmask.f32 256
    %vm228 = vmand %vm226, %vm227
    %v229 = vld [vmem:[#allocation2] sm:$0x1]
    %v230 = vsel %vm228, %v225, %v229
    %231 = vst [vmem:[#allocation2] sm:$0x1] %v230
    %v233 = vunpack.c.l.b16 %v225
    %v234 = vpack.c.b16 %v233, %v233
    %v236 = vshrl.u32 %v234, 16
    %v238 = vrot.slane %v236, 4
    %v239 = vrot.slane %v238, 4
    %240 = vrot.lane.b32.xlu0 %v239, 16
    %v241 = vpop.permute.xlu0 %240
    %vm243 = vcmask 254080
    %vm244 = vmand %vm243, %vm227
    %v245 = vld [vmem:[#allocation2] sm:$0x1]
    %v246 = vsel %vm244, %v241, %v245
    %247 = vst [vmem:[#allocation2] sm:$0x1] %v246
    %v248 = vrot.slane %v234, 5
    %v249 = vrot.slane %v248, 4
    %250 = vrot.lane.b32.xlu0 %v249, 32
    %v251 = vpop.permute.xlu0 %250
    %vm253 = vcmask 385280
    %vm254 = vmand %vm253, %vm227
    %v255 = vld [vmem:[#allocation2] sm:$0x1]
    %v256 = vsel %vm254, %v251, %v255
    %257 = vst [vmem:[#allocation2] sm:$0x1] %v256
    %v258 = vrot.slane %v236, 5
    %v259 = vrot.slane %v258, 4
    %260 = vrot.lane.b32.xlu0 %v259, 48
    %v261 = vpop.permute.xlu0 %260
    %vm263 = vcmask 516480
    %vm264 = vmand %vm263, %vm227
    %v265 = vld [vmem:[#allocation2] sm:$0x1]
    %v266 = vsel %vm264, %v261, %v265
    %267 = vst [vmem:[#allocation2] sm:$0x1] %v266
    %s268 = sld [smem:[#allocation3 + $0x1]]
    %s269 = smul.u32 %s268, 2
    %s270 = smul.addr %s269, 2
    %s271 = scalar_lea.vmem %s1, %s270
    %v272 = vld [vmem:[%s271] sm:$0xf]
    %s273 = scalar_lea.vmem %s2, 128
    %v274 = vld [vmem:[%s273] sm:$0xf]
    %v275 = vld [vmem:[%s273 + $0x4] sm:$0xf]
    %v276 = vld [vmem:[%s273 + $0x8] sm:$0xf]
    %v277 = vld [vmem:[%s273 + $0xc] sm:$0xf]
    %v278 = vld [vmem:[%s273 + $0x10] sm:$0xf]
    %v279 = vld [vmem:[%s273 + $0x14] sm:$0xf]
    %v280 = vld [vmem:[%s273 + $0x18] sm:$0xf]
    %v281 = vld [vmem:[%s273 + $0x1c] sm:$0xf]
    %v282 = vld [vmem:[%s273 + $0x20] sm:$0xf]
    %v283 = vld [vmem:[%s273 + $0x24] sm:$0xf]
    %v284 = vld [vmem:[%s273 + $0x28] sm:$0xf]
    %v285 = vld [vmem:[%s273 + $0x2c] sm:$0xf]
    %v286 = vld [vmem:[%s273 + $0x30] sm:$0xf]
    %v287 = vld [vmem:[%s273 + $0x34] sm:$0xf]
    %v288 = vld [vmem:[%s273 + $0x38] sm:$0xf]
    %v289 = vld [vmem:[%s273 + $0x3c] sm:$0xf]
    %v290 = vld [vmem:[%s273 + $0x40] sm:$0xf]
    %v291 = vld [vmem:[%s273 + $0x44] sm:$0xf]
    %v292 = vld [vmem:[%s273 + $0x48] sm:$0xf]
    %v293 = vld [vmem:[%s273 + $0x4c] sm:$0xf]
    %v294 = vld [vmem:[%s273 + $0x50] sm:$0xf]
    %v295 = vld [vmem:[%s273 + $0x54] sm:$0xf]
    %v296 = vld [vmem:[%s273 + $0x58] sm:$0xf]
    %v297 = vld [vmem:[%s273 + $0x5c] sm:$0xf]
    %v298 = vld [vmem:[%s273 + $0x60] sm:$0xf]
    %v299 = vld [vmem:[%s273 + $0x64] sm:$0xf]
    %v300 = vld [vmem:[%s273 + $0x68] sm:$0xf]
    %v301 = vld [vmem:[%s273 + $0x6c] sm:$0xf]
    %v302 = vld [vmem:[%s273 + $0x70] sm:$0xf]
    %v303 = vld [vmem:[%s273 + $0x74] sm:$0xf]
    %v304 = vld [vmem:[%s273 + $0x78] sm:$0xf]
    %v305 = vld [vmem:[%s273 + $0x7c] sm:$0xf]
    %v308 = vunpack.c.l.s4 1983009808
    %v309 = vunpack.c.0.s8 %v308
    %v310 = vlaneseq
    %v311 = vshrl.u32 %v310, 7
    %v312 = vsub.s32 %v309, %v311
    %v313 = vrot.slane %v272, %v312
    %v314 = vcombine.high %v313, %v313
    %v349 = vunpack.c.l.b16 %v274
    %v350 = vunpack.c.l.b16 %v275
    %v351 = vunpack.c.l.b16 %v276
    %v352 = vunpack.c.l.b16 %v277
    %v353 = vunpack.c.l.b16 %v278
    %v354 = vunpack.c.l.b16 %v279
    %v355 = vunpack.c.l.b16 %v280
    %v356 = vunpack.c.l.b16 %v281
    %v357 = vunpack.c.l.b16 %v282
    %v358 = vunpack.c.l.b16 %v283
    %v359 = vunpack.c.l.b16 %v284
    %v360 = vunpack.c.l.b16 %v285
    %v361 = vunpack.c.l.b16 %v286
    %v362 = vunpack.c.l.b16 %v287
    %v363 = vunpack.c.l.b16 %v288
    %v364 = vunpack.c.l.b16 %v289
    %v365 = vunpack.c.l.b16 %v290
    %v366 = vunpack.c.l.b16 %v291
    %v367 = vunpack.c.l.b16 %v292
    %v368 = vunpack.c.l.b16 %v293
    %v369 = vunpack.c.l.b16 %v294
    %v370 = vunpack.c.l.b16 %v295
    %v371 = vunpack.c.l.b16 %v296
    %v372 = vunpack.c.l.b16 %v297
    %v373 = vunpack.c.l.b16 %v298
    %v374 = vunpack.c.l.b16 %v299
    %v375 = vunpack.c.l.b16 %v300
    %v376 = vunpack.c.l.b16 %v301
    %v377 = vunpack.c.l.b16 %v302
    %v378 = vunpack.c.l.b16 %v303
    %v379 = vunpack.c.l.b16 %v304
    %v380 = vunpack.c.l.b16 %v305
    %v381 = vpack.c.b16 %v350, %v349
    %v382 = vpack.c.b16 %v352, %v351
    %v383 = vpack.c.b16 %v354, %v353
    %v384 = vpack.c.b16 %v356, %v355
    %v385 = vpack.c.b16 %v358, %v357
    %v386 = vpack.c.b16 %v360, %v359
    %v387 = vpack.c.b16 %v362, %v361
    %v388 = vpack.c.b16 %v364, %v363
    %v389 = vpack.c.b16 %v366, %v365
    %v390 = vpack.c.b16 %v368, %v367
    %v391 = vpack.c.b16 %v370, %v369
    %v392 = vpack.c.b16 %v372, %v371
    %v393 = vpack.c.b16 %v374, %v373
    %v394 = vpack.c.b16 %v376, %v375
    %v395 = vpack.c.b16 %v378, %v377
    %v396 = vpack.c.b16 %v380, %v379
    %413 = vmatprep.subr.bf16.mxu0 0
    %414 = vmatpush1.bf16.msra.mxu0 %v381
    %415 = vmatprep.subr.bf16.mxu0 0
    %416 = vmatpush1.bf16.msra.mxu0 %v382
    %417 = vmatprep.subr.bf16.mxu0 0
    %418 = vmatpush1.bf16.msra.mxu0 %v383
    %419 = vmatprep.subr.bf16.mxu0 0
    %420 = vmatpush1.bf16.msra.mxu0 %v384
    %421 = vmatprep.subr.bf16.mxu0 0
    %422 = vmatpush1.bf16.msra.mxu0 %v385
    %423 = vmatprep.subr.bf16.mxu0 0
    %424 = vmatpush1.bf16.msra.mxu0 %v386
    %425 = vmatprep.subr.bf16.mxu0 0
    %426 = vmatpush1.bf16.msra.mxu0 %v387
    %427 = vmatprep.subr.bf16.mxu0 0
    %428 = vmatpush1.bf16.msra.mxu0 %v388
    %429 = vmatprep.subr.bf16.mxu0 0
    %430 = vmatpush1.bf16.msra.mxu0 %v389
    %431 = vmatprep.subr.bf16.mxu0 0
    %432 = vmatpush1.bf16.msra.mxu0 %v390
    %433 = vmatprep.subr.bf16.mxu0 0
    %434 = vmatpush1.bf16.msra.mxu0 %v391
    %435 = vmatprep.subr.bf16.mxu0 0
    %436 = vmatpush1.bf16.msra.mxu0 %v392
    %437 = vmatprep.subr.bf16.mxu0 0
    %438 = vmatpush1.bf16.msra.mxu0 %v393
    %439 = vmatprep.subr.bf16.mxu0 0
    %440 = vmatpush1.bf16.msra.mxu0 %v394
    %441 = vmatprep.subr.bf16.mxu0 0
    %442 = vmatpush1.bf16.msra.mxu0 %v395
    %443 = vmatprep.subr.bf16.mxu0 0
    %444 = vmatpush1.bf16.msra.mxu0 %v396
    %445 = vmatprep.mubr.bf16.mxu0 %v314
    %446 = vmatmul.mubr.bf16.gmra.mrb[0].mxu0 %v313
    %v447 = vpop.f32.mrb[0].mxu0
    %v448 = vadd.f32 0.0, %v447
    %v449 = vpop.f32.mrb[0].mxu0
    %v450 = vpop.f32.mrb[0].mxu0
    %v451 = vpop.f32.mrb[0].mxu0
    %452 = vdwg.mxu0
    %v453 = vpack.c.bf16 %v448, %v448
    %v455 = vunpack.c.l.b16 %v453
    %v456 = vpack.c.b16 %v455, %v455
    %v458 = vshll.u32 %v456, 16
    %vm461 = vsmask.f32 7938
    %vm462 = vmand %vm226, %vm461
    %v463 = vld [vmem:[#allocation2] sm:$0x1]
    %v464 = vsel %vm462, %v458, %v463
    %465 = vst [vmem:[#allocation2] sm:$0x1] %v464
    %466 = vrot.lane.b32.xlu0 %v456, 16
    %v467 = vpop.permute.xlu0 %466
    %vm469 = vmand %vm243, %vm461
    %v470 = vld [vmem:[#allocation2] sm:$0x1]
    %v471 = vsel %vm469, %v467, %v470
    %472 = vst [vmem:[#allocation2] sm:$0x1] %v471
    %v473 = vrot.slane %v458, 5
    %v474 = vrot.slane %v473, 4
    %475 = vrot.lane.b32.xlu0 %v474, 32
    %v476 = vpop.permute.xlu0 %475
    %vm478 = vmand %vm253, %vm461
    %v479 = vld [vmem:[#allocation2] sm:$0x1]
    %v480 = vsel %vm478, %v476, %v479
    %481 = vst [vmem:[#allocation2] sm:$0x1] %v480
    %v482 = vrot.slane %v456, 5
    %v483 = vrot.slane %v482, 4
    %484 = vrot.lane.b32.xlu0 %v483, 48
    %v485 = vpop.permute.xlu0 %484
    %vm487 = vmand %vm263, %vm461
    %v488 = vld [vmem:[#allocation2] sm:$0x1]
    %v489 = vsel %vm487, %v485, %v488
    %490 = vst [vmem:[#allocation2] sm:$0x1] %v489
    %s491 = sld [smem:[#allocation3 + $0x2]]
    %s492 = smul.u32 %s491, 2
    %s493 = smul.addr %s492, 2
    %s494 = scalar_lea.vmem %s1, %s493
    %v495 = vld [vmem:[%s494] sm:$0xf]
    %s496 = scalar_lea.vmem %s2, 256
    %v497 = vld [vmem:[%s496] sm:$0xf]
    %v498 = vld [vmem:[%s496 + $0x4] sm:$0xf]
    %v499 = vld [vmem:[%s496 + $0x8] sm:$0xf]
    %v500 = vld [vmem:[%s496 + $0xc] sm:$0xf]
    %v501 = vld [vmem:[%s496 + $0x10] sm:$0xf]
    %v502 = vld [vmem:[%s496 + $0x14] sm:$0xf]
    %v503 = vld [vmem:[%s496 + $0x18] sm:$0xf]
    %v504 = vld [vmem:[%s496 + $0x1c] sm:$0xf]
    %v505 = vld [vmem:[%s496 + $0x20] sm:$0xf]
    %v506 = vld [vmem:[%s496 + $0x24] sm:$0xf]
    %v507 = vld [vmem:[%s496 + $0x28] sm:$0xf]
    %v508 = vld [vmem:[%s496 + $0x2c] sm:$0xf]
    %v509 = vld [vmem:[%s496 + $0x30] sm:$0xf]
    %v510 = vld [vmem:[%s496 + $0x34] sm:$0xf]
    %v511 = vld [vmem:[%s496 + $0x38] sm:$0xf]
    %v512 = vld [vmem:[%s496 + $0x3c] sm:$0xf]
    %v513 = vld [vmem:[%s496 + $0x40] sm:$0xf]
    %v514 = vld [vmem:[%s496 + $0x44] sm:$0xf]
    %v515 = vld [vmem:[%s496 + $0x48] sm:$0xf]
    %v516 = vld [vmem:[%s496 + $0x4c] sm:$0xf]
    %v517 = vld [vmem:[%s496 + $0x50] sm:$0xf]
    %v518 = vld [vmem:[%s496 + $0x54] sm:$0xf]
    %v519 = vld [vmem:[%s496 + $0x58] sm:$0xf]
    %v520 = vld [vmem:[%s496 + $0x5c] sm:$0xf]
    %v521 = vld [vmem:[%s496 + $0x60] sm:$0xf]
    %v522 = vld [vmem:[%s496 + $0x64] sm:$0xf]
    %v523 = vld [vmem:[%s496 + $0x68] sm:$0xf]
    %v524 = vld [vmem:[%s496 + $0x6c] sm:$0xf]
    %v525 = vld [vmem:[%s496 + $0x70] sm:$0xf]
    %v526 = vld [vmem:[%s496 + $0x74] sm:$0xf]
    %v527 = vld [vmem:[%s496 + $0x78] sm:$0xf]
    %v528 = vld [vmem:[%s496 + $0x7c] sm:$0xf]
    %v531 = vunpack.c.l.s4 1983009808
    %v532 = vunpack.c.0.s8 %v531
    %v533 = vlaneseq
    %v534 = vshrl.u32 %v533, 7
    %v535 = vsub.s32 %v532, %v534
    %v536 = vrot.slane %v495, %v535
    %v537 = vcombine.high %v536, %v536
    %v572 = vunpack.c.l.b16 %v497
    %v573 = vunpack.c.l.b16 %v498
    %v574 = vunpack.c.l.b16 %v499
    %v575 = vunpack.c.l.b16 %v500
    %v576 = vunpack.c.l.b16 %v501
    %v577 = vunpack.c.l.b16 %v502
    %v578 = vunpack.c.l.b16 %v503
    %v579 = vunpack.c.l.b16 %v504
    %v580 = vunpack.c.l.b16 %v505
    %v581 = vunpack.c.l.b16 %v506
    %v582 = vunpack.c.l.b16 %v507
    %v583 = vunpack.c.l.b16 %v508
    %v584 = vunpack.c.l.b16 %v509
    %v585 = vunpack.c.l.b16 %v510
    %v586 = vunpack.c.l.b16 %v511
    %v587 = vunpack.c.l.b16 %v512
    %v588 = vunpack.c.l.b16 %v513
    %v589 = vunpack.c.l.b16 %v514
    %v590 = vunpack.c.l.b16 %v515
    %v591 = vunpack.c.l.b16 %v516
    %v592 = vunpack.c.l.b16 %v517
    %v593 = vunpack.c.l.b16 %v518
    %v594 = vunpack.c.l.b16 %v519
    %v595 = vunpack.c.l.b16 %v520
    %v596 = vunpack.c.l.b16 %v521
    %v597 = vunpack.c.l.b16 %v522
    %v598 = vunpack.c.l.b16 %v523
    %v599 = vunpack.c.l.b16 %v524
    %v600 = vunpack.c.l.b16 %v525
    %v601 = vunpack.c.l.b16 %v526
    %v602 = vunpack.c.l.b16 %v527
    %v603 = vunpack.c.l.b16 %v528
    %v604 = vpack.c.b16 %v573, %v572
    %v605 = vpack.c.b16 %v575, %v574
    %v606 = vpack.c.b16 %v577, %v576
    %v607 = vpack.c.b16 %v579, %v578
    %v608 = vpack.c.b16 %v581, %v580
    %v609 = vpack.c.b16 %v583, %v582
    %v610 = vpack.c.b16 %v585, %v584
    %v611 = vpack.c.b16 %v587, %v586
    %v612 = vpack.c.b16 %v589, %v588
    %v613 = vpack.c.b16 %v591, %v590
    %v614 = vpack.c.b16 %v593, %v592
    %v615 = vpack.c.b16 %v595, %v594
    %v616 = vpack.c.b16 %v597, %v596
    %v617 = vpack.c.b16 %v599, %v598
    %v618 = vpack.c.b16 %v601, %v600
    %v619 = vpack.c.b16 %v603, %v602
    %636 = vmatprep.subr.bf16.mxu0 0
    %637 = vmatpush1.bf16.msra.mxu0 %v604
    %638 = vmatprep.subr.bf16.mxu0 0
    %639 = vmatpush1.bf16.msra.mxu0 %v605
    %640 = vmatprep.subr.bf16.mxu0 0
    %641 = vmatpush1.bf16.msra.mxu0 %v606
    %642 = vmatprep.subr.bf16.mxu0 0
    %643 = vmatpush1.bf16.msra.mxu0 %v607
    %644 = vmatprep.subr.bf16.mxu0 0
    %645 = vmatpush1.bf16.msra.mxu0 %v608
    %646 = vmatprep.subr.bf16.mxu0 0
    %647 = vmatpush1.bf16.msra.mxu0 %v609
    %648 = vmatprep.subr.bf16.mxu0 0
    %649 = vmatpush1.bf16.msra.mxu0 %v610
    %650 = vmatprep.subr.bf16.mxu0 0
    %651 = vmatpush1.bf16.msra.mxu0 %v611
    %652 = vmatprep.subr.bf16.mxu0 0
    %653 = vmatpush1.bf16.msra.mxu0 %v612
    %654 = vmatprep.subr.bf16.mxu0 0
    %655 = vmatpush1.bf16.msra.mxu0 %v613
    %656 = vmatprep.subr.bf16.mxu0 0
    %657 = vmatpush1.bf16.msra.mxu0 %v614
    %658 = vmatprep.subr.bf16.mxu0 0
    %659 = vmatpush1.bf16.msra.mxu0 %v615
    %660 = vmatprep.subr.bf16.mxu0 0
    %661 = vmatpush1.bf16.msra.mxu0 %v616
    %662 = vmatprep.subr.bf16.mxu0 0
    %663 = vmatpush1.bf16.msra.mxu0 %v617
    %664 = vmatprep.subr.bf16.mxu0 0
    %665 = vmatpush1.bf16.msra.mxu0 %v618
    %666 = vmatprep.subr.bf16.mxu0 0
    %667 = vmatpush1.bf16.msra.mxu0 %v619
    %668 = vmatprep.mubr.bf16.mxu0 %v537
    %669 = vmatmul.mubr.bf16.gmra.mrb[0].mxu0 %v536
    %v670 = vpop.f32.mrb[0].mxu0
    %v671 = vadd.f32 0.0, %v670
    %v672 = vpop.f32.mrb[0].mxu0
    %v673 = vpop.f32.mrb[0].mxu0
    %v674 = vpop.f32.mrb[0].mxu0
    %675 = vdwg.mxu0
    %v676 = vpack.c.bf16 %v671, %v671
    %v678 = vunpack.c.l.b16 %v676
    %v679 = vpack.c.b16 %v678, %v678
    %v680 = vrot.slane %v679, 7
    %vm682 = vcmask 123905
    %vm683 = vsmask.f32 1280
    %vm684 = vmand %vm682, %vm683
    %v685 = vld [vmem:[#allocation2] sm:$0x2]
    %v686 = vsel %vm684, %v680, %v685
    %687 = vst [vmem:[#allocation2] sm:$0x2] %v686
    %v689 = vshrl.u32 %v679, 16
    %v691 = vrot.slane %v689, 7
    %692 = vrot.lane.b32.xlu0 %v691, 16
    %v693 = vpop.permute.xlu0 %692
    %vm695 = vcmask 255105
    %vm696 = vmand %vm695, %vm683
    %v697 = vld [vmem:[#allocation2] sm:$0x2]
    %v698 = vsel %vm696, %v693, %v697
    %699 = vst [vmem:[#allocation2] sm:$0x2] %v698
    %700 = vrot.lane.b32.xlu0 %v679, 32
    %v701 = vpop.permute.xlu0 %700
    %vm703 = vcmask 386305
    %vm704 = vmand %vm703, %vm683
    %v705 = vld [vmem:[#allocation2] sm:$0x2]
    %v706 = vsel %vm704, %v701, %v705
    %707 = vst [vmem:[#allocation2] sm:$0x2] %v706
    %v708 = vrot.slane %v689, 4
    %v709 = vrot.slane %v708, 4
    %710 = vrot.lane.b32.xlu0 %v709, 48
    %v711 = vpop.permute.xlu0 %710
    %vm713 = vcmask 517505
    %vm714 = vmand %vm713, %vm683
    %v715 = vld [vmem:[#allocation2] sm:$0x2]
    %v716 = vsel %vm714, %v711, %v715
    %717 = vst [vmem:[#allocation2] sm:$0x2] %v716
    %s718 = sld [smem:[#allocation3 + $0x3]]
    %s719 = smul.u32 %s718, 2
    %s720 = smul.addr %s719, 2
    %s721 = scalar_lea.vmem %s1, %s720
    %v722 = vld [vmem:[%s721] sm:$0xf]
    %s723 = scalar_lea.vmem %s2, 384
    %v724 = vld [vmem:[%s723] sm:$0xf]
    %v725 = vld [vmem:[%s723 + $0x4] sm:$0xf]
    %v726 = vld [vmem:[%s723 + $0x8] sm:$0xf]
    %v727 = vld [vmem:[%s723 + $0xc] sm:$0xf]
    %v728 = vld [vmem:[%s723 + $0x10] sm:$0xf]
    %v729 = vld [vmem:[%s723 + $0x14] sm:$0xf]
    %v730 = vld [vmem:[%s723 + $0x18] sm:$0xf]
    %v731 = vld [vmem:[%s723 + $0x1c] sm:$0xf]
    %v732 = vld [vmem:[%s723 + $0x20] sm:$0xf]
    %v733 = vld [vmem:[%s723 + $0x24] sm:$0xf]
    %v734 = vld [vmem:[%s723 + $0x28] sm:$0xf]
    %v735 = vld [vmem:[%s723 + $0x2c] sm:$0xf]
    %v736 = vld [vmem:[%s723 + $0x30] sm:$0xf]
    %v737 = vld [vmem:[%s723 + $0x34] sm:$0xf]
    %v738 = vld [vmem:[%s723 + $0x38] sm:$0xf]
    %v739 = vld [vmem:[%s723 + $0x3c] sm:$0xf]
    %v740 = vld [vmem:[%s723 + $0x40] sm:$0xf]
    %v741 = vld [vmem:[%s723 + $0x44] sm:$0xf]
    %v742 = vld [vmem:[%s723 + $0x48] sm:$0xf]
    %v743 = vld [vmem:[%s723 + $0x4c] sm:$0xf]
    %v744 = vld [vmem:[%s723 + $0x50] sm:$0xf]
    %v745 = vld [vmem:[%s723 + $0x54] sm:$0xf]
    %v746 = vld [vmem:[%s723 + $0x58] sm:$0xf]
    %v747 = vld [vmem:[%s723 + $0x5c] sm:$0xf]
    %v748 = vld [vmem:[%s723 + $0x60] sm:$0xf]
    %v749 = vld [vmem:[%s723 + $0x64] sm:$0xf]
    %v750 = vld [vmem:[%s723 + $0x68] sm:$0xf]
    %v751 = vld [vmem:[%s723 + $0x6c] sm:$0xf]
    %v752 = vld [vmem:[%s723 + $0x70] sm:$0xf]
    %v753 = vld [vmem:[%s723 + $0x74] sm:$0xf]
    %v754 = vld [vmem:[%s723 + $0x78] sm:$0xf]
    %v755 = vld [vmem:[%s723 + $0x7c] sm:$0xf]
    %v758 = vunpack.c.l.s4 1983009808
    %v759 = vunpack.c.0.s8 %v758
    %v760 = vlaneseq
    %v761 = vshrl.u32 %v760, 7
    %v762 = vsub.s32 %v759, %v761
    %v763 = vrot.slane %v722, %v762
    %v764 = vcombine.high %v763, %v763
    %v799 = vunpack.c.l.b16 %v724
    %v800 = vunpack.c.l.b16 %v725
    %v801 = vunpack.c.l.b16 %v726
    %v802 = vunpack.c.l.b16 %v727
    %v803 = vunpack.c.l.b16 %v728
    %v804 = vunpack.c.l.b16 %v729
    %v805 = vunpack.c.l.b16 %v730
    %v806 = vunpack.c.l.b16 %v731
    %v807 = vunpack.c.l.b16 %v732
    %v808 = vunpack.c.l.b16 %v733
    %v809 = vunpack.c.l.b16 %v734
    %v810 = vunpack.c.l.b16 %v735
    %v811 = vunpack.c.l.b16 %v736
    %v812 = vunpack.c.l.b16 %v737
    %v813 = vunpack.c.l.b16 %v738
    %v814 = vunpack.c.l.b16 %v739
    %v815 = vunpack.c.l.b16 %v740
    %v816 = vunpack.c.l.b16 %v741
    %v817 = vunpack.c.l.b16 %v742
    %v818 = vunpack.c.l.b16 %v743
    %v819 = vunpack.c.l.b16 %v744
    %v820 = vunpack.c.l.b16 %v745
    %v821 = vunpack.c.l.b16 %v746
    %v822 = vunpack.c.l.b16 %v747
    %v823 = vunpack.c.l.b16 %v748
    %v824 = vunpack.c.l.b16 %v749
    %v825 = vunpack.c.l.b16 %v750
    %v826 = vunpack.c.l.b16 %v751
    %v827 = vunpack.c.l.b16 %v752
    %v828 = vunpack.c.l.b16 %v753
    %v829 = vunpack.c.l.b16 %v754
    %v830 = vunpack.c.l.b16 %v755
    %v831 = vpack.c.b16 %v800, %v799
    %v832 = vpack.c.b16 %v802, %v801
    %v833 = vpack.c.b16 %v804, %v803
    %v834 = vpack.c.b16 %v806, %v805
    %v835 = vpack.c.b16 %v808, %v807
    %v836 = vpack.c.b16 %v810, %v809
    %v837 = vpack.c.b16 %v812, %v811
    %v838 = vpack.c.b16 %v814, %v813
    %v839 = vpack.c.b16 %v816, %v815
    %v840 = vpack.c.b16 %v818, %v817
    %v841 = vpack.c.b16 %v820, %v819
    %v842 = vpack.c.b16 %v822, %v821
    %v843 = vpack.c.b16 %v824, %v823
    %v844 = vpack.c.b16 %v826, %v825
    %v845 = vpack.c.b16 %v828, %v827
    %v846 = vpack.c.b16 %v830, %v829
    %863 = vmatprep.subr.bf16.mxu0 0
    %864 = vmatpush1.bf16.msra.mxu0 %v831
    %865 = vmatprep.subr.bf16.mxu0 0
    %866 = vmatpush1.bf16.msra.mxu0 %v832
    %867 = vmatprep.subr.bf16.mxu0 0
    %868 = vmatpush1.bf16.msra.mxu0 %v833
    %869 = vmatprep.subr.bf16.mxu0 0
    %870 = vmatpush1.bf16.msra.mxu0 %v834
    %871 = vmatprep.subr.bf16.mxu0 0
    %872 = vmatpush1.bf16.msra.mxu0 %v835
    %873 = vmatprep.subr.bf16.mxu0 0
    %874 = vmatpush1.bf16.msra.mxu0 %v836
    %875 = vmatprep.subr.bf16.mxu0 0
    %876 = vmatpush1.bf16.msra.mxu0 %v837
    %877 = vmatprep.subr.bf16.mxu0 0
    %878 = vmatpush1.bf16.msra.mxu0 %v838
    %879 = vmatprep.subr.bf16.mxu0 0
    %880 = vmatpush1.bf16.msra.mxu0 %v839
    %881 = vmatprep.subr.bf16.mxu0 0
    %882 = vmatpush1.bf16.msra.mxu0 %v840
    %883 = vmatprep.subr.bf16.mxu0 0
    %884 = vmatpush1.bf16.msra.mxu0 %v841
    %885 = vmatprep.subr.bf16.mxu0 0
    %886 = vmatpush1.bf16.msra.mxu0 %v842
    %887 = vmatprep.subr.bf16.mxu0 0
    %888 = vmatpush1.bf16.msra.mxu0 %v843
    %889 = vmatprep.subr.bf16.mxu0 0
    %890 = vmatpush1.bf16.msra.mxu0 %v844
    %891 = vmatprep.subr.bf16.mxu0 0
    %892 = vmatpush1.bf16.msra.mxu0 %v845
    %893 = vmatprep.subr.bf16.mxu0 0
    %894 = vmatpush1.bf16.msra.mxu0 %v846
    %895 = vmatprep.mubr.bf16.mxu0 %v764
    %896 = vmatmul.mubr.bf16.gmra.mrb[0].mxu0 %v763
    %v897 = vpop.f32.mrb[0].mxu0
    %v898 = vadd.f32 0.0, %v897
    %v899 = vpop.f32.mrb[0].mxu0
    %v900 = vpop.f32.mrb[0].mxu0
    %v901 = vpop.f32.mrb[0].mxu0
    %902 = vdwg.mxu0
    %v903 = vpack.c.bf16 %v898, %v898
    %v905 = vunpack.c.l.b16 %v903
    %v906 = vpack.c.b16 %v905, %v905
    %v908 = vshll.u32 %v906, 16
    %v910 = vrot.slane %v908, 7
    %vm912 = vsmask.f32 7942
    %vm913 = vmand %vm682, %vm912
    %v914 = vld [vmem:[#allocation2] sm:$0x2]
    %v915 = vsel %vm913, %v910, %v914
    %916 = vst [vmem:[#allocation2] sm:$0x2] %v915
    %v917 = vrot.slane %v906, 7
    %918 = vrot.lane.b32.xlu0 %v917, 16
    %v919 = vpop.permute.xlu0 %918
    %vm921 = vmand %vm695, %vm912
    %v922 = vld [vmem:[#allocation2] sm:$0x2]
    %v923 = vsel %vm921, %v919, %v922
    %924 = vst [vmem:[#allocation2] sm:$0x2] %v923
    %925 = vrot.lane.b32.xlu0 %v908, 32
    %v926 = vpop.permute.xlu0 %925
    %vm928 = vmand %vm703, %vm912
    %v929 = vld [vmem:[#allocation2] sm:$0x2]
    %v930 = vsel %vm928, %v926, %v929
    %931 = vst [vmem:[#allocation2] sm:$0x2] %v930
    %932 = vrot.lane.b32.xlu0 %v906, 48
    %v933 = vpop.permute.xlu0 %932
    %vm935 = vmand %vm713, %vm912
    %v936 = vld [vmem:[#allocation2] sm:$0x2]
    %v937 = vsel %vm935, %v933, %v936
    %938 = vst [vmem:[#allocation2] sm:$0x2] %v937
    %s939 = sld [smem:[#allocation3 + $0x4]]
    %s940 = smul.u32 %s939, 2
    %s941 = smul.addr %s940, 2
    %s942 = scalar_lea.vmem %s1, %s941
    %v943 = vld [vmem:[%s942] sm:$0xf]
    %s944 = scalar_lea.vmem %s2, 512
    %v945 = vld [vmem:[%s944] sm:$0xf]
    %v946 = vld [vmem:[%s944 + $0x4] sm:$0xf]
    %v947 = vld [vmem:[%s944 + $0x8] sm:$0xf]
    %v948 = vld [vmem:[%s944 + $0xc] sm:$0xf]
    %v949 = vld [vmem:[%s944 + $0x10] sm:$0xf]
    %v950 = vld [vmem:[%s944 + $0x14] sm:$0xf]
    %v951 = vld [vmem:[%s944 + $0x18] sm:$0xf]
    %v952 = vld [vmem:[%s944 + $0x1c] sm:$0xf]
    %v953 = vld [vmem:[%s944 + $0x20] sm:$0xf]
    %v954 = vld [vmem:[%s944 + $0x24] sm:$0xf]
    %v955 = vld [vmem:[%s944 + $0x28] sm:$0xf]
    %v956 = vld [vmem:[%s944 + $0x2c] sm:$0xf]
    %v957 = vld [vmem:[%s944 + $0x30] sm:$0xf]
    %v958 = vld [vmem:[%s944 + $0x34] sm:$0xf]
    %v959 = vld [vmem:[%s944 + $0x38] sm:$0xf]
    %v960 = vld [vmem:[%s944 + $0x3c] sm:$0xf]
    %v961 = vld [vmem:[%s944 + $0x40] sm:$0xf]
    %v962 = vld [vmem:[%s944 + $0x44] sm:$0xf]
    %v963 = vld [vmem:[%s944 + $0x48] sm:$0xf]
    %v964 = vld [vmem:[%s944 + $0x4c] sm:$0xf]
    %v965 = vld [vmem:[%s944 + $0x50] sm:$0xf]
    %v966 = vld [vmem:[%s944 + $0x54] sm:$0xf]
    %v967 = vld [vmem:[%s944 + $0x58] sm:$0xf]
    %v968 = vld [vmem:[%s944 + $0x5c] sm:$0xf]
    %v969 = vld [vmem:[%s944 + $0x60] sm:$0xf]
    %v970 = vld [vmem:[%s944 + $0x64] sm:$0xf]
    %v971 = vld [vmem:[%s944 + $0x68] sm:$0xf]
    %v972 = vld [vmem:[%s944 + $0x6c] sm:$0xf]
    %v973 = vld [vmem:[%s944 + $0x70] sm:$0xf]
    %v974 = vld [vmem:[%s944 + $0x74] sm:$0xf]
    %v975 = vld [vmem:[%s944 + $0x78] sm:$0xf]
    %v976 = vld [vmem:[%s944 + $0x7c] sm:$0xf]
    %v979 = vunpack.c.l.s4 1983009808
    %v980 = vunpack.c.0.s8 %v979
    %v981 = vlaneseq
    %v982 = vshrl.u32 %v981, 7
    %v983 = vsub.s32 %v980, %v982
    %v984 = vrot.slane %v943, %v983
    %v985 = vcombine.high %v984, %v984
    %v1020 = vunpack.c.l.b16 %v945
    %v1021 = vunpack.c.l.b16 %v946
    %v1022 = vunpack.c.l.b16 %v947
    %v1023 = vunpack.c.l.b16 %v948
    %v1024 = vunpack.c.l.b16 %v949
    %v1025 = vunpack.c.l.b16 %v950
    %v1026 = vunpack.c.l.b16 %v951
    %v1027 = vunpack.c.l.b16 %v952
    %v1028 = vunpack.c.l.b16 %v953
    %v1029 = vunpack.c.l.b16 %v954
    %v1030 = vunpack.c.l.b16 %v955
    %v1031 = vunpack.c.l.b16 %v956
    %v1032 = vunpack.c.l.b16 %v957
    %v1033 = vunpack.c.l.b16 %v958
    %v1034 = vunpack.c.l.b16 %v959
    %v1035 = vunpack.c.l.b16 %v960
    %v1036 = vunpack.c.l.b16 %v961
    %v1037 = vunpack.c.l.b16 %v962
    %v1038 = vunpack.c.l.b16 %v963
    %v1039 = vunpack.c.l.b16 %v964
    %v1040 = vunpack.c.l.b16 %v965
    %v1041 = vunpack.c.l.b16 %v966
    %v1042 = vunpack.c.l.b16 %v967
    %v1043 = vunpack.c.l.b16 %v968
    %v1044 = vunpack.c.l.b16 %v969
    %v1045 = vunpack.c.l.b16 %v970
    %v1046 = vunpack.c.l.b16 %v971
    %v1047 = vunpack.c.l.b16 %v972
    %v1048 = vunpack.c.l.b16 %v973
    %v1049 = vunpack.c.l.b16 %v974
    %v1050 = vunpack.c.l.b16 %v975
    %v1051 = vunpack.c.l.b16 %v976
    %v1052 = vpack.c.b16 %v1021, %v1020
    %v1053 = vpack.c.b16 %v1023, %v1022
    %v1054 = vpack.c.b16 %v1025, %v1024
    %v1055 = vpack.c.b16 %v1027, %v1026
    %v1056 = vpack.c.b16 %v1029, %v1028
    %v1057 = vpack.c.b16 %v1031, %v1030
    %v1058 = vpack.c.b16 %v1033, %v1032
    %v1059 = vpack.c.b16 %v1035, %v1034
    %v1060 = vpack.c.b16 %v1037, %v1036
    %v1061 = vpack.c.b16 %v1039, %v1038
    %v1062 = vpack.c.b16 %v1041, %v1040
    %v1063 = vpack.c.b16 %v1043, %v1042
    %v1064 = vpack.c.b16 %v1045, %v1044
    %v1065 = vpack.c.b16 %v1047, %v1046
    %v1066 = vpack.c.b16 %v1049, %v1048
    %v1067 = vpack.c.b16 %v1051, %v1050
    %1084 = vmatprep.subr.bf16.mxu0 0
    %1085 = vmatpush1.bf16.msra.mxu0 %v1052
    %1086 = vmatprep.subr.bf16.mxu0 0
    %1087 = vmatpush1.bf16.msra.mxu0 %v1053
    %1088 = vmatprep.subr.bf16.mxu0 0
    %1089 = vmatpush1.bf16.msra.mxu0 %v1054
    %1090 = vmatprep.subr.bf16.mxu0 0
    %1091 = vmatpush1.bf16.msra.mxu0 %v1055
    %1092 = vmatprep.subr.bf16.mxu0 0
    %1093 = vmatpush1.bf16.msra.mxu0 %v1056
    %1094 = vmatprep.subr.bf16.mxu0 0
    %1095 = vmatpush1.bf16.msra.mxu0 %v1057
    %1096 = vmatprep.subr.bf16.mxu0 0
    %1097 = vmatpush1.bf16.msra.mxu0 %v1058
    %1098 = vmatprep.subr.bf16.mxu0 0
    %1099 = vmatpush1.bf16.msra.mxu0 %v1059
    %1100 = vmatprep.subr.bf16.mxu0 0
    %1101 = vmatpush1.bf16.msra.mxu0 %v1060
    %1102 = vmatprep.subr.bf16.mxu0 0
    %1103 = vmatpush1.bf16.msra.mxu0 %v1061
    %1104 = vmatprep.subr.bf16.mxu0 0
    %1105 = vmatpush1.bf16.msra.mxu0 %v1062
    %1106 = vmatprep.subr.bf16.mxu0 0
    %1107 = vmatpush1.bf16.msra.mxu0 %v1063
    %1108 = vmatprep.subr.bf16.mxu0 0
    %1109 = vmatpush1.bf16.msra.mxu0 %v1064
    %1110 = vmatprep.subr.bf16.mxu0 0
    %1111 = vmatpush1.bf16.msra.mxu0 %v1065
    %1112 = vmatprep.subr.bf16.mxu0 0
    %1113 = vmatpush1.bf16.msra.mxu0 %v1066
    %1114 = vmatprep.subr.bf16.mxu0 0
    %1115 = vmatpush1.bf16.msra.mxu0 %v1067
    %1116 = vmatprep.mubr.bf16.mxu0 %v985
    %1117 = vmatmul.mubr.bf16.gmra.mrb[0].mxu0 %v984
    %v1118 = vpop.f32.mrb[0].mxu0
    %v1119 = vadd.f32 0.0, %v1118
    %v1120 = vpop.f32.mrb[0].mxu0
    %v1121 = vpop.f32.mrb[0].mxu0
    %v1122 = vpop.f32.mrb[0].mxu0
    %1123 = vdwg.mxu0
    %v1124 = vpack.c.bf16 %v1119, %v1119
    %v1126 = vunpack.c.l.b16 %v1124
    %v1127 = vpack.c.b16 %v1126, %v1126
    %v1128 = vrot.slane %v1127, 6
    %vm1130 = vcmask 124930
    %vm1131 = vsmask.f32 2304
    %vm1132 = vmand %vm1130, %vm1131
    %v1133 = vld [vmem:[#allocation2] sm:$0x4]
    %v1134 = vsel %vm1132, %v1128, %v1133
    %1135 = vst [vmem:[#allocation2] sm:$0x4] %v1134
    %v1137 = vshrl.u32 %v1127, 16
    %v1139 = vrot.slane %v1137, 6
    %1140 = vrot.lane.b32.xlu0 %v1139, 16
    %v1141 = vpop.permute.xlu0 %1140
    %vm1143 = vcmask 256130
    %vm1144 = vmand %vm1143, %vm1131
    %v1145 = vld [vmem:[#allocation2] sm:$0x4]
    %v1146 = vsel %vm1144, %v1141, %v1145
    %1147 = vst [vmem:[#allocation2] sm:$0x4] %v1146
    %v1148 = vrot.slane %v1127, 7
    %1149 = vrot.lane.b32.xlu0 %v1148, 32
    %v1150 = vpop.permute.xlu0 %1149
    %vm1152 = vcmask 387330
    %vm1153 = vmand %vm1152, %vm1131
    %v1154 = vld [vmem:[#allocation2] sm:$0x4]
    %v1155 = vsel %vm1153, %v1150, %v1154
    %1156 = vst [vmem:[#allocation2] sm:$0x4] %v1155
    %v1157 = vrot.slane %v1137, 7
    %1158 = vrot.lane.b32.xlu0 %v1157, 48
    %v1159 = vpop.permute.xlu0 %1158
    %vm1161 = vcmask 518530
    %vm1162 = vmand %vm1161, %vm1131
    %v1163 = vld [vmem:[#allocation2] sm:$0x4]
    %v1164 = vsel %vm1162, %v1159, %v1163
    %1165 = vst [vmem:[#allocation2] sm:$0x4] %v1164
    %s1166 = sld [smem:[#allocation3 + $0x5]]
    %s1167 = smul.u32 %s1166, 2
    %s1168 = smul.addr %s1167, 2
    %s1169 = scalar_lea.vmem %s1, %s1168
    %v1170 = vld [vmem:[%s1169] sm:$0xf]
    %s1171 = scalar_lea.vmem %s2, 640
    %v1172 = vld [vmem:[%s1171] sm:$0xf]
    %v1173 = vld [vmem:[%s1171 + $0x4] sm:$0xf]
    %v1174 = vld [vmem:[%s1171 + $0x8] sm:$0xf]
    %v1175 = vld [vmem:[%s1171 + $0xc] sm:$0xf]
    %v1176 = vld [vmem:[%s1171 + $0x10] sm:$0xf]
    %v1177 = vld [vmem:[%s1171 + $0x14] sm:$0xf]
    %v1178 = vld [vmem:[%s1171 + $0x18] sm:$0xf]
    %v1179 = vld [vmem:[%s1171 + $0x1c] sm:$0xf]
    %v1180 = vld [vmem:[%s1171 + $0x20] sm:$0xf]
    %v1181 = vld [vmem:[%s1171 + $0x24] sm:$0xf]
    %v1182 = vld [vmem:[%s1171 + $0x28] sm:$0xf]
    %v1183 = vld [vmem:[%s1171 + $0x2c] sm:$0xf]
    %v1184 = vld [vmem:[%s1171 + $0x30] sm:$0xf]
    %v1185 = vld [vmem:[%s1171 + $0x34] sm:$0xf]
    %v1186 = vld [vmem:[%s1171 + $0x38] sm:$0xf]
    %v1187 = vld [vmem:[%s1171 + $0x3c] sm:$0xf]
    %v1188 = vld [vmem:[%s1171 + $0x40] sm:$0xf]
    %v1189 = vld [vmem:[%s1171 + $0x44] sm:$0xf]
    %v1190 = vld [vmem:[%s1171 + $0x48] sm:$0xf]
    %v1191 = vld [vmem:[%s1171 + $0x4c] sm:$0xf]
    %v1192 = vld [vmem:[%s1171 + $0x50] sm:$0xf]
    %v1193 = vld [vmem:[%s1171 + $0x54] sm:$0xf]
    %v1194 = vld [vmem:[%s1171 + $0x58] sm:$0xf]
    %v1195 = vld [vmem:[%s1171 + $0x5c] sm:$0xf]
    %v1196 = vld [vmem:[%s1171 + $0x60] sm:$0xf]
    %v1197 = vld [vmem:[%s1171 + $0x64] sm:$0xf]
    %v1198 = vld [vmem:[%s1171 + $0x68] sm:$0xf]
    %v1199 = vld [vmem:[%s1171 + $0x6c] sm:$0xf]
    %v1200 = vld [vmem:[%s1171 + $0x70] sm:$0xf]
    %v1201 = vld [vmem:[%s1171 + $0x74] sm:$0xf]
    %v1202 = vld [vmem:[%s1171 + $0x78] sm:$0xf]
    %v1203 = vld [vmem:[%s1171 + $0x7c] sm:$0xf]
    %v1206 = vunpack.c.l.s4 1983009808
    %v1207 = vunpack.c.0.s8 %v1206
    %v1208 = vlaneseq
    %v1209 = vshrl.u32 %v1208, 7
    %v1210 = vsub.s32 %v1207, %v1209
    %v1211 = vrot.slane %v1170, %v1210
    %v1212 = vcombine.high %v1211, %v1211
    %v1247 = vunpack.c.l.b16 %v1172
    %v1248 = vunpack.c.l.b16 %v1173
    %v1249 = vunpack.c.l.b16 %v1174
    %v1250 = vunpack.c.l.b16 %v1175
    %v1251 = vunpack.c.l.b16 %v1176
    %v1252 = vunpack.c.l.b16 %v1177
    %v1253 = vunpack.c.l.b16 %v1178
    %v1254 = vunpack.c.l.b16 %v1179
    %v1255 = vunpack.c.l.b16 %v1180
    %v1256 = vunpack.c.l.b16 %v1181
    %v1257 = vunpack.c.l.b16 %v1182
    %v1258 = vunpack.c.l.b16 %v1183
    %v1259 = vunpack.c.l.b16 %v1184
    %v1260 = vunpack.c.l.b16 %v1185
    %v1261 = vunpack.c.l.b16 %v1186
    %v1262 = vunpack.c.l.b16 %v1187
    %v1263 = vunpack.c.l.b16 %v1188
    %v1264 = vunpack.c.l.b16 %v1189
    %v1265 = vunpack.c.l.b16 %v1190
    %v1266 = vunpack.c.l.b16 %v1191
    %v1267 = vunpack.c.l.b16 %v1192
    %v1268 = vunpack.c.l.b16 %v1193
    %v1269 = vunpack.c.l.b16 %v1194
    %v1270 = vunpack.c.l.b16 %v1195
    %v1271 = vunpack.c.l.b16 %v1196
    %v1272 = vunpack.c.l.b16 %v1197
    %v1273 = vunpack.c.l.b16 %v1198
    %v1274 = vunpack.c.l.b16 %v1199
    %v1275 = vunpack.c.l.b16 %v1200
    %v1276 = vunpack.c.l.b16 %v1201
    %v1277 = vunpack.c.l.b16 %v1202
    %v1278 = vunpack.c.l.b16 %v1203
    %v1279 = vpack.c.b16 %v1248, %v1247
    %v1280 = vpack.c.b16 %v1250, %v1249
    %v1281 = vpack.c.b16 %v1252, %v1251
    %v1282 = vpack.c.b16 %v1254, %v1253
    %v1283 = vpack.c.b16 %v1256, %v1255
    %v1284 = vpack.c.b16 %v1258, %v1257
    %v1285 = vpack.c.b16 %v1260, %v1259
    %v1286 = vpack.c.b16 %v1262, %v1261
    %v1287 = vpack.c.b16 %v1264, %v1263
    %v1288 = vpack.c.b16 %v1266, %v1265
    %v1289 = vpack.c.b16 %v1268, %v1267
    %v1290 = vpack.c.b16 %v1270, %v1269
    %v1291 = vpack.c.b16 %v1272, %v1271
    %v1292 = vpack.c.b16 %v1274, %v1273
    %v1293 = vpack.c.b16 %v1276, %v1275
    %v1294 = vpack.c.b16 %v1278, %v1277
    %1311 = vmatprep.subr.bf16.mxu0 0
    %1312 = vmatpush1.bf16.msra.mxu0 %v1279
    %1313 = vmatprep.subr.bf16.mxu0 0
    %1314 = vmatpush1.bf16.msra.mxu0 %v1280
    %1315 = vmatprep.subr.bf16.mxu0 0
    %1316 = vmatpush1.bf16.msra.mxu0 %v1281
    %1317 = vmatprep.subr.bf16.mxu0 0
    %1318 = vmatpush1.bf16.msra.mxu0 %v1282
    %1319 = vmatprep.subr.bf16.mxu0 0
    %1320 = vmatpush1.bf16.msra.mxu0 %v1283
    %1321 = vmatprep.subr.bf16.mxu0 0
    %1322 = vmatpush1.bf16.msra.mxu0 %v1284
    %1323 = vmatprep.subr.bf16.mxu0 0
    %1324 = vmatpush1.bf16.msra.mxu0 %v1285
    %1325 = vmatprep.subr.bf16.mxu0 0
    %1326 = vmatpush1.bf16.msra.mxu0 %v1286
    %1327 = vmatprep.subr.bf16.mxu0 0
    %1328 = vmatpush1.bf16.msra.mxu0 %v1287
    %1329 = vmatprep.subr.bf16.mxu0 0
    %1330 = vmatpush1.bf16.msra.mxu0 %v1288
    %1331 = vmatprep.subr.bf16.mxu0 0
    %1332 = vmatpush1.bf16.msra.mxu0 %v1289
    %1333 = vmatprep.subr.bf16.mxu0 0
    %1334 = vmatpush1.bf16.msra.mxu0 %v1290
    %1335 = vmatprep.subr.bf16.mxu0 0
    %1336 = vmatpush1.bf16.msra.mxu0 %v1291
    %1337 = vmatprep.subr.bf16.mxu0 0
    %1338 = vmatpush1.bf16.msra.mxu0 %v1292
    %1339 = vmatprep.subr.bf16.mxu0 0
    %1340 = vmatpush1.bf16.msra.mxu0 %v1293
    %1341 = vmatprep.subr.bf16.mxu0 0
    %1342 = vmatpush1.bf16.msra.mxu0 %v1294
    %1343 = vmatprep.mubr.bf16.mxu0 %v1212
    %1344 = vmatmul.mubr.bf16.gmra.mrb[0].mxu0 %v1211
    %v1345 = vpop.f32.mrb[0].mxu0
    %v1346 = vadd.f32 0.0, %v1345
    %v1347 = vpop.f32.mrb[0].mxu0
    %v1348 = vpop.f32.mrb[0].mxu0
    %v1349 = vpop.f32.mrb[0].mxu0
    %1350 = vdwg.mxu0
    %v1351 = vpack.c.bf16 %v1346, %v1346
    %v1353 = vunpack.c.l.b16 %v1351
    %v1354 = vpack.c.b16 %v1353, %v1353
    %v1356 = vshll.u32 %v1354, 16
    %v1358 = vrot.slane %v1356, 6
    %vm1360 = vsmask.f32 7946
    %vm1361 = vmand %vm1130, %vm1360
    %v1362 = vld [vmem:[#allocation2] sm:$0x4]
    %v1363 = vsel %vm1361, %v1358, %v1362
    %1364 = vst [vmem:[#allocation2] sm:$0x4] %v1363
    %v1365 = vrot.slane %v1354, 6
    %1366 = vrot.lane.b32.xlu0 %v1365, 16
    %v1367 = vpop.permute.xlu0 %1366
    %vm1369 = vmand %vm1143, %vm1360
    %v1370 = vld [vmem:[#allocation2] sm:$0x4]
    %v1371 = vsel %vm1369, %v1367, %v1370
    %1372 = vst [vmem:[#allocation2] sm:$0x4] %v1371
    %v1373 = vrot.slane %v1356, 7
    %1374 = vrot.lane.b32.xlu0 %v1373, 32
    %v1375 = vpop.permute.xlu0 %1374
    %vm1377 = vmand %vm1152, %vm1360
    %v1378 = vld [vmem:[#allocation2] sm:$0x4]
    %v1379 = vsel %vm1377, %v1375, %v1378
    %1380 = vst [vmem:[#allocation2] sm:$0x4] %v1379
    %v1381 = vrot.slane %v1354, 7
    %1382 = vrot.lane.b32.xlu0 %v1381, 48
    %v1383 = vpop.permute.xlu0 %1382
    %vm1385 = vmand %vm1161, %vm1360
    %v1386 = vld [vmem:[#allocation2] sm:$0x4]
    %v1387 = vsel %vm1385, %v1383, %v1386
    %1388 = vst [vmem:[#allocation2] sm:$0x4] %v1387
    %v1389 = vld [vmem:[#allocation2] sm:$0x7]
    %v1390 = vld [vmem:[%s3] sm:$0xf]
    %v1391 = vld [vmem:[%s3 + $0x4] sm:$0xf]
    %v1392 = vld [vmem:[%s3 + $0x8] sm:$0xf]
    %v1393 = vld [vmem:[%s3 + $0xc] sm:$0xf]
    %v1394 = vld [vmem:[%s3 + $0x10] sm:$0xf]
    %v1395 = vld [vmem:[%s3 + $0x14] sm:$0xf]
    %v1396 = vld [vmem:[%s3 + $0x18] sm:$0xf]
    %v1397 = vld [vmem:[%s3 + $0x1c] sm:$0xf]
    %v1398 = vld [vmem:[%s4] sm:$0x1]
    %v1400 = vlaneseq
    %v1401 = vshrl.u32 %v1400, 7
    %v1402 = vsub.s32 0, %v1401
    %v1403 = vrot.slane %v1398, %v1402
    %v1413 = vunpack.c.l.b16 %v1390
    %v1414 = vunpack.c.l.b16 %v1391
    %v1415 = vunpack.c.l.b16 %v1392
    %v1416 = vunpack.c.l.b16 %v1393
    %v1417 = vunpack.c.l.b16 %v1394
    %v1418 = vunpack.c.l.b16 %v1395
    %v1419 = vunpack.c.l.b16 %v1396
    %v1420 = vunpack.c.l.b16 %v1397
    %v1421 = vpack.c.b16 %v1414, %v1413
    %v1422 = vpack.c.b16 %v1416, %v1415
    %v1423 = vpack.c.b16 %v1418, %v1417
    %v1424 = vpack.c.b16 %v1420, %v1419
    %vm1429 = vcmask 523264
    %v1431 = vsel %vm1429, %v1389, 0
    %1433 = vmatprep.subr.bf16.mxu0 0
    %1434 = vmatpush1.bf16.msra.mxu0 %v1421
    %1435 = vmatprep.subr.bf16.mxu0 0
    %1436 = vmatpush1.bf16.msra.mxu0 %v1422
    %1437 = vmatprep.subr.bf16.mxu0 0
    %1438 = vmatpush1.bf16.msra.mxu0 %v1423
    %1439 = vmatprep.subr.bf16.mxu0 0
    %1440 = vmatpush1.bf16.msra.mxu0 %v1424
    %1441 = vmatprep.subr.bf16.mxu0 0
    %1442 = vmatpush1.bf16.msra.mxu0 0
    %1443 = vmatprep.subr.bf16.mxu0 0
    %1444 = vmatpush1.bf16.msra.mxu0 0
    %1445 = vmatprep.subr.bf16.mxu0 0
    %1446 = vmatpush1.bf16.msra.mxu0 0
    %1447 = vmatprep.subr.bf16.mxu0 0
    %1448 = vmatpush1.bf16.msra.mxu0 0
    %1449 = vmatprep.subr.bf16.mxu0 0
    %1450 = vmatpush1.bf16.msra.mxu0 0
    %1451 = vmatprep.subr.bf16.mxu0 0
    %1452 = vmatpush1.bf16.msra.mxu0 0
    %1453 = vmatprep.subr.bf16.mxu0 0
    %1454 = vmatpush1.bf16.msra.mxu0 0
    %1455 = vmatprep.subr.bf16.mxu0 0
    %1456 = vmatpush1.bf16.msra.mxu0 0
    %1457 = vmatprep.subr.bf16.mxu0 0
    %1458 = vmatpush1.bf16.msra.mxu0 0
    %1459 = vmatprep.subr.bf16.mxu0 0
    %1460 = vmatpush1.bf16.msra.mxu0 0
    %1461 = vmatprep.subr.bf16.mxu0 0
    %1462 = vmatpush1.bf16.msra.mxu0 0
    %1463 = vmatprep.subr.bf16.mxu0 0
    %1464 = vmatpush1.bf16.msra.mxu0 0
    %1465 = vmatprep.mubr.bf16.mxu0 0
    %1466 = vmatmul.mubr.bf16.gmra.mrb[0].mxu0 %v1431
    %v1467 = vpop.f32.mrb[0].mxu0
    %v1468 = vadd.f32 %v1403, %v1467
    %v1469 = vpop.f32.mrb[0].mxu0
    %v1470 = vpop.f32.mrb[0].mxu0
    %v1471 = vpop.f32.mrb[0].mxu0
    %1472 = vdwg.mxu0
    %v1473 = vmax.f32 %v1468, 0.0
    %v1474 = vpack.c.bf16 %v1473, %v1473
    %v1475 = vld [vmem:[%s5] sm:$0xf]
    %v1476 = vld [vmem:[%s5 + $0x4] sm:$0xf]
    %v1477 = vld [vmem:[%s5 + $0x8] sm:$0xf]
    %v1478 = vld [vmem:[%s5 + $0xc] sm:$0xf]
    %v1479 = vld [vmem:[%s6] sm:$0x1]
    %v1481 = vlaneseq
    %v1482 = vshrl.u32 %v1481, 7
    %v1483 = vsub.s32 0, %v1482
    %v1484 = vrot.slane %v1479, %v1483
    %v1490 = vunpack.c.l.b16 %v1475
    %v1491 = vunpack.c.l.b16 %v1476
    %v1492 = vunpack.c.l.b16 %v1477
    %v1493 = vunpack.c.l.b16 %v1478
    %v1494 = vpack.c.b16 %v1491, %v1490
    %v1495 = vpack.c.b16 %v1493, %v1492
    %vm1498 = vcmask 261120
    %v1500 = vsel %vm1498, %v1474, 0
    %1502 = vmatprep.subr.bf16.mxu0 0
    %1503 = vmatpush1.bf16.msra.mxu0 %v1494
    %1504 = vmatprep.subr.bf16.mxu0 0
    %1505 = vmatpush1.bf16.msra.mxu0 %v1495
    %1506 = vmatprep.subr.bf16.mxu0 0
    %1507 = vmatpush1.bf16.msra.mxu0 0
    %1508 = vmatprep.subr.bf16.mxu0 0
    %1509 = vmatpush1.bf16.msra.mxu0 0
    %1510 = vmatprep.subr.bf16.mxu0 0
    %1511 = vmatpush1.bf16.msra.mxu0 0
    %1512 = vmatprep.subr.bf16.mxu0 0
    %1513 = vmatpush1.bf16.msra.mxu0 0
    %1514 = vmatprep.subr.bf16.mxu0 0
    %1515 = vmatpush1.bf16.msra.mxu0 0
    %1516 = vmatprep.subr.bf16.mxu0 0
    %1517 = vmatpush1.bf16.msra.mxu0 0
    %1518 = vmatprep.subr.bf16.mxu0 0
    %1519 = vmatpush1.bf16.msra.mxu0 0
    %1520 = vmatprep.subr.bf16.mxu0 0
    %1521 = vmatpush1.bf16.msra.mxu0 0
    %1522 = vmatprep.subr.bf16.mxu0 0
    %1523 = vmatpush1.bf16.msra.mxu0 0
    %1524 = vmatprep.subr.bf16.mxu0 0
    %1525 = vmatpush1.bf16.msra.mxu0 0
    %1526 = vmatprep.subr.bf16.mxu0 0
    %1527 = vmatpush1.bf16.msra.mxu0 0
    %1528 = vmatprep.subr.bf16.mxu0 0
    %1529 = vmatpush1.bf16.msra.mxu0 0
    %1530 = vmatprep.subr.bf16.mxu0 0
    %1531 = vmatpush1.bf16.msra.mxu0 0
    %1532 = vmatprep.subr.bf16.mxu0 0
    %1533 = vmatpush1.bf16.msra.mxu0 0
    %1534 = vmatprep.mubr.bf16.mxu0 0
    %1535 = vmatmul.mubr.bf16.gmra.mrb[0].mxu0 %v1500
    %v1536 = vpop.f32.mrb[0].mxu0
    %v1537 = vadd.f32 %v1484, %v1536
    %v1538 = vpop.f32.mrb[0].mxu0
    %v1539 = vpop.f32.mrb[0].mxu0
    %v1540 = vpop.f32.mrb[0].mxu0
    %1541 = vdwg.mxu0
    %v1542 = vmax.f32 %v1537, 0.0
    %vm1543 = vcmask 259072
    %1544 = vst.msk [vmem:[#allocation6] sm:$0x3f] %vm1543, %v1542
    // Predicated region
    $region34: #{_lambda_.3} parent=1 // pred_check
      _
    $region35: #{_lambda_.3} parent=1 // pred_check_branch
      %1546 = sbr.rel (0) target = $region37
    $region36: #{_lambda_.3} parent=1 // pred_region
      %s1548 = ssub.s32 128, 128
      %1549 = vsyncadd [#allocation4], %s1548
      %s1551 = sshll.u32 [#allocation6], 4
      %s1552 = int_to_ptr.vmem [resolvable:$true] %s1551
      %1554 = dma.vmem_to_hbm [thread:$0]  %s1552, 128, %s7, [#allocation4]
    $region37: #{_lambda_.3} parent=1 // pred_fallthru
      _
    // Predicated region
    $region38: #{_lambda_.3} parent=1 // pred_check
      _
    $region39: #{_lambda_.3} parent=1 // pred_check_branch
      %1556 = sbr.rel (0) target = $region41
    $region40: #{_lambda_.3} parent=1 // pred_region
      %1557 = dma.done [#allocation4], 128
    $region41: #{_lambda_.3} parent=1 // pred_fallthru
      _
    %1558 = vsyncpa [#allocation4], 1
    %1559 = vsyncpa [#allocation5], 1

</llo_original>
